<compile_context>
chip_gen: v7x
topology: tpu7x:2x2x1
jax: 0.10.0
libtpu: 0.0.40
codegen_flags: <defaults>
</compile_context>

<pallas_src>
import jax
import jax.numpy as jnp
from jax.experimental import pallas as pl
import numpy as np

EMBED = 32
HEADS = 4
HEAD_DIM = EMBED // HEADS          # 8
FWD_EXP = 2
FF = FWD_EXP * EMBED               # 64
SEQ = HEAD_DIM                     # the reference module forces seq_len == embed // heads
BATCH = 2
NTOK = BATCH * SEQ                 # 16 folded (batch, seq) rows == keys per attention
NEG_INF = -1e20
LN_EPS = 1e-5
LANES = 128

# ---- const slab layout (row offsets, all multiples of 8; 128 lanes wide) ------------------
ROW_W1 = 0      # (32,128): [Wq1_bd | Wk1_bd | Wv1_bd | Wq2_bd]   (32 lanes each)
ROW_W2 = 32     # (32,128): [Wk2_bd | Wv2_bd | Wfc1   | Wfc2  ]
ROW_W3 = 64     # (32,128): [Wff1 (64 lanes)     | Wff2^T (64 lanes)]
ROW_MASK1 = 96  # (16, 64): additive causal+batch mask for self-attn, tiled over heads
ROW_MASK2 = 112 # (16, 64): additive batch mask for cross-attn, tiled over heads
ROW_VEC = 128   # 8 rows: bfc1, ng, nb, bfc2, n1g, n1b, bff2 (32 lanes), bff1 (64 lanes)
ROW_HM = 136    # (4, 32): head lane masks (+4 pad rows)
SLAB_ROWS = 144


# ---------------- pure-JAX reference (faithful per-batch / per-head port) -----------------

def _softmax(x):
    m = jnp.max(x, axis=-1, keepdims=True)
    e = jnp.exp(x - m)
    return e / jnp.sum(e, axis=-1, keepdims=True)


def _layer_norm(x, gamma, beta):
    mu = jnp.mean(x, axis=-1, keepdims=True)
    var = jnp.mean((x - mu) ** 2, axis=-1, keepdims=True)
    return (x - mu) / jnp.sqrt(var + LN_EPS) * gamma + beta


def _self_attention(xq, xk, xv, mask, wq, wk, wv, wfc, bfc):
    """Port of SelfAttention.forward for one batch element. xq: (Sq,E), xk/xv: (Sk,E)."""
    sk = xk.shape[0]
    scale = 1.0 / (float(sk) ** 0.5)   # reference scales by sqrt(d_key) == sqrt(seq_len_k)
    head_outs = []
    for h in range(HEADS):
        sl = slice(h * HEAD_DIM, (h + 1) * HEAD_DIM)
        q = jnp.dot(xq[:, sl], wq, preferred_element_type=jnp.float32)
        k = jnp.dot(xk[:, sl], wk, preferred_element_type=jnp.float32)
        v = jnp.dot(xv[:, sl], wv, preferred_element_type=jnp.float32)
        energy = jax.lax.dot_general(q, k, (((1,), (1,)), ((), ())),
                                     preferred_element_type=jnp.float32)   # (Sq, Sk)
        energy = jnp.where(mask == 0, NEG_INF, energy)
        att = _softmax(energy * scale)
        head_outs.append(jnp.dot(att, v, preferred_element_type=jnp.float32))
    cat = jnp.concatenate(head_outs, axis=-1)
    return jnp.dot(cat, wfc, preferred_element_type=jnp.float32) + bfc


def _decoder_block(x, value, key, src_mask, trg_mask, p):
    """Full DecoderBlock.forward for one batch element. x/value/key: (S, E)."""
    att1 = _self_attention(x, x, x, trg_mask,
                           p["wq1"], p["wk1"], p["wv1"], p["wfc1"], p["bfc1"])
    query = _layer_norm(att1 + x, p["ng"], p["nb"])
    att2 = _self_attention(query, key, value, src_mask,
                           p["wq2"], p["wk2"], p["wv2"], p["wfc2"], p["bfc2"])
    x1 = _layer_norm(att2 + query, p["n1g"], p["n1b"])
    h = jnp.maximum(jnp.dot(x1, p["wff1"], preferred_element_type=jnp.float32) + p["bff1"], 0.0)
    ff = jnp.dot(h, p["wff2"], preferred_element_type=jnp.float32) + p["bff2"]
    return _layer_norm(ff + x1, p["n1g"], p["n1b"])   # reference reuses norm1 here


# ---------------- Pallas kernel ------------------------------------------------------------

def decoder_block_kernel(acts_ref, c_ref, out_ref):
    x = acts_ref[0:NTOK, :]                        # (16,32) decoder input, batch folded into rows
    kv = acts_ref[NTOK:3 * NTOK, :]                # (32,32) stacked [encoder keys; encoder values]

    head_mask = c_ref[ROW_HM:ROW_HM + HEADS, 0:EMBED]             # (4,32): 1.0 on head-h lanes
    mask1 = c_ref[ROW_MASK1:ROW_MASK1 + NTOK, 0:HEADS * NTOK]     # (16,64) additive masks
    mask2 = c_ref[ROW_MASK2:ROW_MASK2 + NTOK, 0:HEADS * NTOK]
    vec = c_ref[ROW_VEC:ROW_VEC + 8, :]
    bfc1, ng, nb = vec[0:1, 0:EMBED], vec[1:2, 0:EMBED], vec[2:3, 0:EMBED]
    bfc2, n1g, n1b = vec[3:4, 0:EMBED], vec[4:5, 0:EMBED], vec[5:6, 0:EMBED]
    bff2, bff1 = vec[6:7, 0:EMBED], vec[7:8, 0:FF]

    scale = 1.0 / (float(SEQ) ** 0.5)              # sqrt(d_key) == sqrt(seq_len_keys) per reference

    def layer_norm(v, g, b):
        mu = jnp.mean(v, axis=-1, keepdims=True)
        var = jnp.mean((v - mu) ** 2, axis=-1, keepdims=True)
        return (v - mu) * jax.lax.rsqrt(var + LN_EPS) * g + b

    def head_stack(m):
        # (16, E) -> (H*16, E): row h*16+j = m[j] with only head-h lanes kept (rest zero)
        return (head_mask[:, None, :] * m[None, :, :]).reshape(HEADS * NTOK, EMBED)

    def attention(q, k, v, add_mask):
        # q/k/v: (16, E) projected activations; add_mask: (16, H*16) additive (0 / -1e20)
        k_stack = head_stack(k)                                    # (64, 32)
        v_stack = head_stack(v)                                    # (64, 32)
        # all (head, query, key) energies in ONE matmul: energy[i, h*16+j] = q_h[i] . k_h[j]
        energy = jax.lax.dot_general(q, k_stack, (((1,), (1,)), ((), ())),
                                     preferred_element_type=jnp.float32)    # (16, 64)
        # NOTE: additive -1e20 mask is equivalent to the reference's masked_fill(-1e20) only
        # because no softmax row is fully masked (causal diag / all-ones src mask) and
        # |energy| << 1e20; revisit this if the mask semantics ever change (avoid 0/0 rows).
        logits = (energy + add_mask) * scale
        # exact per-head softmax over 16-lane segments (no approx reciprocal)
        att_parts = []
        for h in range(HEADS):
            lg = logits[:, h * NTOK:(h + 1) * NTOK]                          # (16, 16)
            m = jnp.max(lg, axis=-1, keepdims=True)
            e = jnp.exp(lg - m)
            att_parts.append(e / jnp.sum(e, axis=-1, keepdims=True))
        att = jnp.concatenate(att_parts, axis=-1)                            # (16, 64)
        # att @ V over all heads in ONE matmul; head h only feeds head-h output lanes
        return jnp.dot(att, v_stack, preferred_element_type=jnp.float32)     # (16, 32)

    # --- all input-dependent projections up front (2 fused 128-lane matmuls) ---
    proj1 = jnp.dot(x, c_ref[ROW_W1:ROW_W1 + EMBED, :], preferred_element_type=jnp.float32)
    q1 = proj1[:, 0:EMBED]                              # x @ Wq1
    k1 = proj1[:, EMBED:2 * EMBED]                      # x @ Wk1
    v1 = proj1[:, 2 * EMBED:3 * EMBED]                  # x @ Wv1
    projkv = jnp.dot(kv, c_ref[ROW_W2:ROW_W2 + EMBED, :], preferred_element_type=jnp.float32)
    k2 = projkv[0:NTOK, 0:EMBED]                        # key   @ Wk2
    v2 = projkv[NTOK:2 * NTOK, EMBED:2 * EMBED]         # value @ Wv2

    # --- masked self-attention + fc_out + residual + LayerNorm (dropout == identity) ---
    av1 = attention(q1, k1, v1, mask1)
    fc1 = jnp.dot(av1, c_ref[ROW_W2:ROW_W2 + EMBED, :], preferred_element_type=jnp.float32)
    att1 = fc1[:, 2 * EMBED:3 * EMBED] + bfc1           # av1 @ Wfc1 + bfc1
    query = layer_norm(att1 + x, ng, nb)

    # --- TransformerBlock: cross attention + fc_out + residual + norm1 ---
    q2 = jnp.dot(query, c_ref[ROW_W1:ROW_W1 + EMBED, :],
                 preferred_element_type=jnp.float32)[:, 3 * EMBED:4 * EMBED]   # query @ Wq2
    av2 = attention(q2, k2, v2, mask2)
    fc2 = jnp.dot(av2, c_ref[ROW_W2:ROW_W2 + EMBED, :], preferred_element_type=jnp.float32)
    att2 = fc2[:, 3 * EMBED:4 * EMBED] + bfc2           # av2 @ Wfc2 + bfc2
    x1 = layer_norm(att2 + query, n1g, n1b)

    # --- feed-forward + residual + norm1 (the reference reuses norm1; norm2 is never used) ---
    hpre = jnp.dot(x1, c_ref[ROW_W3:ROW_W3 + EMBED, :], preferred_element_type=jnp.float32)
    h = jnp.maximum(hpre[:, 0:FF] + bff1, 0.0)
    wff2t = c_ref[ROW_W3:ROW_W3 + EMBED, FF:2 * FF]                            # (32, 64) = Wff2^T
    ff = jax.lax.dot_general(h, wff2t, (((1,), (1,)), ((), ())),
                             preferred_element_type=jnp.float32) + bff2
    out_ref[...] = layer_norm(ff + x1, n1g, n1b).astype(out_ref.dtype)


# ---------------- host-side packing (done ONCE per model) ----------------------------------

def _block_diag(w):
    """Per-head (D,D) weight -> (E,E) block-diagonal; the same w is shared by all heads."""
    return jnp.kron(jnp.eye(HEADS, dtype=w.dtype), w)


def _additive_mask(mask2d, batch):
    """(S,S) 0/1 mask -> (B*S, HEADS*B*S) additive mask (0 = attend, -1e20 = blocked or
    cross-batch), laid out to match energy[i, h*NTOK + j]."""
    allow = (mask2d != 0).astype(jnp.float32)
    within = jnp.kron(jnp.eye(batch, dtype=jnp.float32), allow)               # (N, N)
    add = jnp.where(within == 0, jnp.float32(NEG_INF), jnp.float32(0.0))
    return jnp.tile(add, (1, HEADS))                                          # (N, H*N)


def build_const_slab(p, src_mask, trg_mask):
    """Pack ALL weights, biases, LayerNorm params, head masks and additive attention masks
    into one lane-dense (144, 128) f32 slab."""
    r0 = jnp.concatenate([_block_diag(p["wq1"]), _block_diag(p["wk1"]),
                          _block_diag(p["wv1"]), _block_diag(p["wq2"])], axis=1)      # (32,128)
    r1 = jnp.concatenate([_block_diag(p["wk2"]), _block_diag(p["wv2"]),
                          p["wfc1"], p["wfc2"]], axis=1)                              # (32,128)
    r2 = jnp.concatenate([p["wff1"], p["wff2"].T], axis=1)                            # (32,128)
    masks = jnp.concatenate([_additive_mask(trg_mask, BATCH),
                             _additive_mask(src_mask, BATCH)], axis=0)                # (32, 64)
    r3 = jnp.pad(masks, ((0, 0), (0, LANES - masks.shape[1])))                        # (32,128)
    vec = jnp.zeros((8, LANES), jnp.float32)
    vec = vec.at[0, 0:EMBED].set(p["bfc1"]).at[1, 0:EMBED].set(p["ng"])
    vec = vec.at[2, 0:EMBED].set(p["nb"]).at[3, 0:EMBED].set(p["bfc2"])
    vec = vec.at[4, 0:EMBED].set(p["n1g"]).at[5, 0:EMBED].set(p["n1b"])
    vec = vec.at[6, 0:EMBED].set(p["bff2"]).at[7, 0:FF].set(p["bff1"])
    head_mask = jnp.repeat(jnp.eye(HEADS, dtype=jnp.float32), HEAD_DIM, axis=1)       # (4,32)
    hm = jnp.zeros((8, LANES), jnp.float32).at[0:HEADS, 0:EMBED].set(head_mask)
    slab = jnp.concatenate([r0, r1, r2, r3, vec, hm], axis=0)                         # (144,128)
    assert slab.shape == (SLAB_ROWS, LANES)
    return slab


def make_decoder_block(params, src_mask, trg_mask):
    """Returns a jitted (x, value, key) -> (B,S,E) callable. Parameter/mask packing happens
    here once; per-call host work is a single small activation concat fused by XLA."""
    cslab = build_const_slab(params, src_mask, trg_mask)

    @jax.jit
    def run(x, value, key):
        assert x.shape == (BATCH, SEQ, EMBED)
        acts = jnp.concatenate([x.reshape(NTOK, EMBED),
                                key.reshape(NTOK, EMBED),
                                value.reshape(NTOK, EMBED)], axis=0)         # (48, 32)
        out = pl.pallas_call(
            decoder_block_kernel,
            out_shape=jax.ShapeDtypeStruct((NTOK, EMBED), jnp.float32),
            # grid-less call: whole problem (<100 KiB) lives in VMEM, single-buffered,
            # so there is no grid / double-buffering / BlockSpec machinery at all.
        )(acts, cslab)
        return out.reshape(BATCH, SEQ, EMBED)

    return run


# ---------------- parameter / input construction -------------------------------------------

def init_params(rng):
    keys = jax.random.split(rng, 16)
    sc = 0.1
    return {
        # DecoderBlock.attention
        "wq1": sc * jax.random.normal(keys[0], (HEAD_DIM, HEAD_DIM), jnp.float32),
        "wk1": sc * jax.random.normal(keys[1], (HEAD_DIM, HEAD_DIM), jnp.float32),
        "wv1": sc * jax.random.normal(keys[2], (HEAD_DIM, HEAD_DIM), jnp.float32),
        "wfc1": sc * jax.random.normal(keys[3], (EMBED, EMBED), jnp.float32),
        "bfc1": sc * jax.random.normal(keys[4], (EMBED,), jnp.float32),
        # DecoderBlock.norm (PyTorch default init: weight=1, bias=0)
        "ng": jnp.ones((EMBED,), jnp.float32),
        "nb": jnp.zeros((EMBED,), jnp.float32),
        # TransformerBlock.attention
        "wq2": sc * jax.random.normal(keys[5], (HEAD_DIM, HEAD_DIM), jnp.float32),
        "wk2": sc * jax.random.normal(keys[6], (HEAD_DIM, HEAD_DIM), jnp.float32),
        "wv2": sc * jax.random.normal(keys[7], (HEAD_DIM, HEAD_DIM), jnp.float32),
        "wfc2": sc * jax.random.normal(keys[8], (EMBED, EMBED), jnp.float32),
        "bfc2": sc * jax.random.normal(keys[9], (EMBED,), jnp.float32),
        # TransformerBlock.norm1 (norm2 is unused by the reference forward)
        "n1g": jnp.ones((EMBED,), jnp.float32),
        "n1b": jnp.zeros((EMBED,), jnp.float32),
        # TransformerBlock.feed_forward
        "wff1": sc * jax.random.normal(keys[10], (EMBED, FF), jnp.float32),
        "bff1": sc * jax.random.normal(keys[11], (FF,), jnp.float32),
        "wff2": sc * jax.random.normal(keys[12], (FF, EMBED), jnp.float32),
        "bff2": sc * jax.random.normal(keys[13], (EMBED,), jnp.float32),
    }


if __name__ == "__main__":
    root = jax.random.PRNGKey(0)
    k_par, k_x, k_v, k_k = jax.random.split(root, 4)

    params = init_params(k_par)
    x = jax.random.normal(k_x, (BATCH, SEQ, EMBED), jnp.float32)
    value = jax.random.normal(k_v, (BATCH, SEQ, EMBED), jnp.float32)
    key = jax.random.normal(k_k, (BATCH, SEQ, EMBED), jnp.float32)

    trg_mask = jnp.tril(jnp.ones((SEQ, SEQ), jnp.float32))   # causal mask for self-attn
    src_mask = jnp.ones((SEQ, SEQ), jnp.float32)             # no masking for cross-attn

    decoder_fn = make_decoder_block(params, src_mask, trg_mask)   # slabs/masks packed once
    out = jax.block_until_ready(decoder_fn(x, value, key))

    # pure-JAX reference (faithful per-batch / per-head math) for a sanity check.
    # Tolerance tightened from 2e-3 to 1e-3: the approximate EUP reciprocal is gone and the
    # kernel feeds exactly the same operand values to every matmul as the reference does.
    ref = jax.vmap(lambda xb, vb, kb: _decoder_block(xb, vb, kb, src_mask, trg_mask, params))(
        x, value, key)
    np.testing.assert_allclose(np.asarray(out), np.asarray(ref), rtol=1e-3, atol=1e-3)

    print("KERNEL_OK")
</pallas_src>

<mosaic_0001>
module attributes {stable_mosaic.version = 11 : i64} {
  func.func @decoder_block_kernel(%arg0: memref<48x32xf32, #tpu.memory_space<vmem>>, %arg1: memref<144x128xf32, #tpu.memory_space<vmem>>, %arg2: memref<16x32xf32, #tpu.memory_space<vmem>>) attributes {dimension_semantics = [], scalar_prefetch = 0 : i64, scratch_operands = 0 : i64, tpu.core_type = #tpu.core_type<tc>} {
    %c0 = arith.constant 0 : index
    %c0_0 = arith.constant 0 : index
    %0 = vector.load %arg0[%c0, %c0_0] : memref<48x32xf32, #tpu.memory_space<vmem>>, vector<16x32xf32>
    %c16 = arith.constant 16 : index
    %c0_1 = arith.constant 0 : index
    %1 = vector.load %arg0[%c16, %c0_1] : memref<48x32xf32, #tpu.memory_space<vmem>>, vector<32x32xf32>
    %c136 = arith.constant 136 : index
    %c0_2 = arith.constant 0 : index
    %2 = vector.load %arg1[%c136, %c0_2] : memref<144x128xf32, #tpu.memory_space<vmem>>, vector<4x32xf32>
    %c96 = arith.constant 96 : index
    %c0_3 = arith.constant 0 : index
    %3 = vector.load %arg1[%c96, %c0_3] : memref<144x128xf32, #tpu.memory_space<vmem>>, vector<16x64xf32>
    %c112 = arith.constant 112 : index
    %c0_4 = arith.constant 0 : index
    %4 = vector.load %arg1[%c112, %c0_4] : memref<144x128xf32, #tpu.memory_space<vmem>>, vector<16x64xf32>
    %c128 = arith.constant 128 : index
    %c0_5 = arith.constant 0 : index
    %5 = vector.load %arg1[%c128, %c0_5] : memref<144x128xf32, #tpu.memory_space<vmem>>, vector<8x128xf32>
    %6 = vector.extract_strided_slice %5 {offsets = [0, 0], sizes = [1, 32], strides = [1, 1]} : vector<8x128xf32> to vector<1x32xf32>
    %7 = vector.extract_strided_slice %5 {offsets = [1, 0], sizes = [1, 32], strides = [1, 1]} : vector<8x128xf32> to vector<1x32xf32>
    %8 = vector.extract_strided_slice %5 {offsets = [2, 0], sizes = [1, 32], strides = [1, 1]} : vector<8x128xf32> to vector<1x32xf32>
    %9 = vector.extract_strided_slice %5 {offsets = [3, 0], sizes = [1, 32], strides = [1, 1]} : vector<8x128xf32> to vector<1x32xf32>
    %10 = vector.extract_strided_slice %5 {offsets = [4, 0], sizes = [1, 32], strides = [1, 1]} : vector<8x128xf32> to vector<1x32xf32>
    %11 = vector.extract_strided_slice %5 {offsets = [5, 0], sizes = [1, 32], strides = [1, 1]} : vector<8x128xf32> to vector<1x32xf32>
    %12 = vector.extract_strided_slice %5 {offsets = [6, 0], sizes = [1, 32], strides = [1, 1]} : vector<8x128xf32> to vector<1x32xf32>
    %13 = vector.extract_strided_slice %5 {offsets = [7, 0], sizes = [1, 64], strides = [1, 1]} : vector<8x128xf32> to vector<1x64xf32>
    %c0_6 = arith.constant 0 : index
    %c0_7 = arith.constant 0 : index
    %14 = vector.load %arg1[%c0_6, %c0_7] : memref<144x128xf32, #tpu.memory_space<vmem>>, vector<32x128xf32>
    %cst = arith.constant dense<0.000000e+00> : vector<16x128xf32>
    %15 = tpu.matmul %0, %14, %cst {dimension_numbers = #tpu.dot_dimension_numbers<[1], [0], [0], [1], [0, 0, 1, 1], [], []>} : vector<16x32xf32>, vector<32x128xf32>, vector<16x128xf32> -> vector<16x128xf32>
    %16 = vector.extract_strided_slice %15 {offsets = [0, 0], sizes = [16, 32], strides = [1, 1]} : vector<16x128xf32> to vector<16x32xf32>
    %17 = vector.extract_strided_slice %15 {offsets = [0, 32], sizes = [16, 32], strides = [1, 1]} : vector<16x128xf32> to vector<16x32xf32>
    %18 = vector.extract_strided_slice %15 {offsets = [0, 64], sizes = [16, 32], strides = [1, 1]} : vector<16x128xf32> to vector<16x32xf32>
    %c32 = arith.constant 32 : index
    %c0_8 = arith.constant 0 : index
    %19 = vector.load %arg1[%c32, %c0_8] : memref<144x128xf32, #tpu.memory_space<vmem>>, vector<32x128xf32>
    %cst_9 = arith.constant dense<0.000000e+00> : vector<32x128xf32>
    %20 = tpu.matmul %1, %19, %cst_9 {dimension_numbers = #tpu.dot_dimension_numbers<[1], [0], [0], [1], [0, 0, 1, 1], [], []>} : vector<32x32xf32>, vector<32x128xf32>, vector<32x128xf32> -> vector<32x128xf32>
    %21 = vector.extract_strided_slice %20 {offsets = [0, 0], sizes = [16, 32], strides = [1, 1]} : vector<32x128xf32> to vector<16x32xf32>
    %22 = vector.extract_strided_slice %20 {offsets = [16, 32], sizes = [16, 32], strides = [1, 1]} : vector<32x128xf32> to vector<16x32xf32>
    %23 = vector.shape_cast %2 : vector<4x32xf32> to vector<4x1x32xf32>
    %24 = vector.shape_cast %17 : vector<16x32xf32> to vector<1x16x32xf32>
    %25 = vector.broadcast %23 : vector<4x1x32xf32> to vector<4x16x32xf32>
    %26 = vector.broadcast %24 : vector<1x16x32xf32> to vector<4x16x32xf32>
    %27 = arith.mulf %25, %26 : vector<4x16x32xf32>
    %28 = vector.shape_cast %27 : vector<4x16x32xf32> to vector<64x32xf32>
    %29 = vector.shape_cast %2 : vector<4x32xf32> to vector<4x1x32xf32>
    %30 = vector.shape_cast %18 : vector<16x32xf32> to vector<1x16x32xf32>
    %31 = vector.broadcast %29 : vector<4x1x32xf32> to vector<4x16x32xf32>
    %32 = vector.broadcast %30 : vector<1x16x32xf32> to vector<4x16x32xf32>
    %33 = arith.mulf %31, %32 : vector<4x16x32xf32>
    %34 = vector.shape_cast %33 : vector<4x16x32xf32> to vector<64x32xf32>
    %cst_10 = arith.constant dense<0.000000e+00> : vector<16x64xf32>
    %35 = tpu.matmul %16, %28, %cst_10 {dimension_numbers = #tpu.dot_dimension_numbers<[1], [1], [0], [0], [0, 0, 1, 0], [], []>} : vector<16x32xf32>, vector<64x32xf32>, vector<16x64xf32> -> vector<16x64xf32>
    %36 = arith.addf %35, %3 : vector<16x64xf32>
    %cst_11 = arith.constant 0.353553385 : f32
    %37 = vector.broadcast %cst_11 : f32 to vector<16x64xf32>
    %38 = arith.mulf %36, %37 : vector<16x64xf32>
    %39 = vector.extract_strided_slice %38 {offsets = [0, 0], sizes = [16, 16], strides = [1, 1]} : vector<16x64xf32> to vector<16x16xf32>
    %cst_12 = arith.constant dense<0xFF800000> : vector<16xf32>
    %40 = vector.multi_reduction <maximumf>, %39, %cst_12 [1] : vector<16x16xf32> to vector<16xf32>
    %41 = vector.shape_cast %40 : vector<16xf32> to vector<16x1xf32>
    %42 = vector.broadcast %41 : vector<16x1xf32> to vector<16x16xf32>
    %43 = arith.subf %39, %42 : vector<16x16xf32>
    %44 = math.exp %43 : vector<16x16xf32>
    %cst_13 = arith.constant dense<0.000000e+00> : vector<16xf32>
    %45 = vector.multi_reduction <add>, %44, %cst_13 [1] : vector<16x16xf32> to vector<16xf32>
    %46 = vector.shape_cast %45 : vector<16xf32> to vector<16x1xf32>
    %47 = vector.broadcast %46 : vector<16x1xf32> to vector<16x16xf32>
    %48 = arith.divf %44, %47 : vector<16x16xf32>
    %49 = vector.extract_strided_slice %38 {offsets = [0, 16], sizes = [16, 16], strides = [1, 1]} : vector<16x64xf32> to vector<16x16xf32>
    %cst_14 = arith.constant dense<0xFF800000> : vector<16xf32>
    %50 = vector.multi_reduction <maximumf>, %49, %cst_14 [1] : vector<16x16xf32> to vector<16xf32>
    %51 = vector.shape_cast %50 : vector<16xf32> to vector<16x1xf32>
    %52 = vector.broadcast %51 : vector<16x1xf32> to vector<16x16xf32>
    %53 = arith.subf %49, %52 : vector<16x16xf32>
    %54 = math.exp %53 : vector<16x16xf32>
    %cst_15 = arith.constant dense<0.000000e+00> : vector<16xf32>
    %55 = vector.multi_reduction <add>, %54, %cst_15 [1] : vector<16x16xf32> to vector<16xf32>
    %56 = vector.shape_cast %55 : vector<16xf32> to vector<16x1xf32>
    %57 = vector.broadcast %56 : vector<16x1xf32> to vector<16x16xf32>
    %58 = arith.divf %54, %57 : vector<16x16xf32>
    %59 = vector.extract_strided_slice %38 {offsets = [0, 32], sizes = [16, 16], strides = [1, 1]} : vector<16x64xf32> to vector<16x16xf32>
    %cst_16 = arith.constant dense<0xFF800000> : vector<16xf32>
    %60 = vector.multi_reduction <maximumf>, %59, %cst_16 [1] : vector<16x16xf32> to vector<16xf32>
    %61 = vector.shape_cast %60 : vector<16xf32> to vector<16x1xf32>
    %62 = vector.broadcast %61 : vector<16x1xf32> to vector<16x16xf32>
    %63 = arith.subf %59, %62 : vector<16x16xf32>
    %64 = math.exp %63 : vector<16x16xf32>
    %cst_17 = arith.constant dense<0.000000e+00> : vector<16xf32>
    %65 = vector.multi_reduction <add>, %64, %cst_17 [1] : vector<16x16xf32> to vector<16xf32>
    %66 = vector.shape_cast %65 : vector<16xf32> to vector<16x1xf32>
    %67 = vector.broadcast %66 : vector<16x1xf32> to vector<16x16xf32>
    %68 = arith.divf %64, %67 : vector<16x16xf32>
    %69 = vector.extract_strided_slice %38 {offsets = [0, 48], sizes = [16, 16], strides = [1, 1]} : vector<16x64xf32> to vector<16x16xf32>
    %cst_18 = arith.constant dense<0xFF800000> : vector<16xf32>
    %70 = vector.multi_reduction <maximumf>, %69, %cst_18 [1] : vector<16x16xf32> to vector<16xf32>
    %71 = vector.shape_cast %70 : vector<16xf32> to vector<16x1xf32>
    %72 = vector.broadcast %71 : vector<16x1xf32> to vector<16x16xf32>
    %73 = arith.subf %69, %72 : vector<16x16xf32>
    %74 = math.exp %73 : vector<16x16xf32>
    %cst_19 = arith.constant dense<0.000000e+00> : vector<16xf32>
    %75 = vector.multi_reduction <add>, %74, %cst_19 [1] : vector<16x16xf32> to vector<16xf32>
    %76 = vector.shape_cast %75 : vector<16xf32> to vector<16x1xf32>
    %77 = vector.broadcast %76 : vector<16x1xf32> to vector<16x16xf32>
    %78 = arith.divf %74, %77 : vector<16x16xf32>
    %79 = tpu.concatenate %48, %58, %68, %78 in 1 : vector<16x16xf32>, vector<16x16xf32>, vector<16x16xf32>, vector<16x16xf32> -> vector<16x64xf32>
    %cst_20 = arith.constant dense<0.000000e+00> : vector<16x32xf32>
    %80 = tpu.matmul %79, %34, %cst_20 {dimension_numbers = #tpu.dot_dimension_numbers<[1], [0], [0], [1], [0, 0, 1, 1], [], []>} : vector<16x64xf32>, vector<64x32xf32>, vector<16x32xf32> -> vector<16x32xf32>
    %c32_21 = arith.constant 32 : index
    %c0_22 = arith.constant 0 : index
    %81 = vector.load %arg1[%c32_21, %c0_22] : memref<144x128xf32, #tpu.memory_space<vmem>>, vector<32x128xf32>
    %cst_23 = arith.constant dense<0.000000e+00> : vector<16x128xf32>
    %82 = tpu.matmul %80, %81, %cst_23 {dimension_numbers = #tpu.dot_dimension_numbers<[1], [0], [0], [1], [0, 0, 1, 1], [], []>} : vector<16x32xf32>, vector<32x128xf32>, vector<16x128xf32> -> vector<16x128xf32>
    %83 = vector.extract_strided_slice %82 {offsets = [0, 64], sizes = [16, 32], strides = [1, 1]} : vector<16x128xf32> to vector<16x32xf32>
    %84 = vector.broadcast %6 : vector<1x32xf32> to vector<16x32xf32>
    %85 = arith.addf %83, %84 : vector<16x32xf32>
    %86 = arith.addf %85, %0 : vector<16x32xf32>
    %cst_24 = arith.constant dense<0.000000e+00> : vector<16xf32>
    %87 = vector.multi_reduction <add>, %86, %cst_24 [1] : vector<16x32xf32> to vector<16xf32>
    %88 = vector.shape_cast %87 : vector<16xf32> to vector<16x1xf32>
    %cst_25 = arith.constant 3.200000e+01 : f32
    %89 = vector.broadcast %cst_25 : f32 to vector<16x1xf32>
    %90 = arith.divf %88, %89 : vector<16x1xf32>
    %91 = vector.broadcast %90 : vector<16x1xf32> to vector<16x32xf32>
    %92 = arith.subf %86, %91 : vector<16x32xf32>
    %93 = arith.mulf %92, %92 : vector<16x32xf32>
    %cst_26 = arith.constant dense<0.000000e+00> : vector<16xf32>
    %94 = vector.multi_reduction <add>, %93, %cst_26 [1] : vector<16x32xf32> to vector<16xf32>
    %95 = vector.shape_cast %94 : vector<16xf32> to vector<16x1xf32>
    %cst_27 = arith.constant 3.200000e+01 : f32
    %96 = vector.broadcast %cst_27 : f32 to vector<16x1xf32>
    %97 = arith.divf %95, %96 : vector<16x1xf32>
    %98 = vector.broadcast %90 : vector<16x1xf32> to vector<16x32xf32>
    %99 = arith.subf %86, %98 : vector<16x32xf32>
    %cst_28 = arith.constant 9.99999974E-6 : f32
    %100 = vector.broadcast %cst_28 : f32 to vector<16x1xf32>
    %101 = arith.addf %97, %100 : vector<16x1xf32>
    %102 = math.rsqrt %101 : vector<16x1xf32>
    %103 = vector.broadcast %102 : vector<16x1xf32> to vector<16x32xf32>
    %104 = arith.mulf %99, %103 : vector<16x32xf32>
    %105 = vector.broadcast %7 : vector<1x32xf32> to vector<16x32xf32>
    %106 = arith.mulf %104, %105 : vector<16x32xf32>
    %107 = vector.broadcast %8 : vector<1x32xf32> to vector<16x32xf32>
    %108 = arith.addf %106, %107 : vector<16x32xf32>
    %c0_29 = arith.constant 0 : index
    %c0_30 = arith.constant 0 : index
    %109 = vector.load %arg1[%c0_29, %c0_30] : memref<144x128xf32, #tpu.memory_space<vmem>>, vector<32x128xf32>
    %cst_31 = arith.constant dense<0.000000e+00> : vector<16x128xf32>
    %110 = tpu.matmul %108, %109, %cst_31 {dimension_numbers = #tpu.dot_dimension_numbers<[1], [0], [0], [1], [0, 0, 1, 1], [], []>} : vector<16x32xf32>, vector<32x128xf32>, vector<16x128xf32> -> vector<16x128xf32>
    %111 = vector.extract_strided_slice %110 {offsets = [0, 96], sizes = [16, 32], strides = [1, 1]} : vector<16x128xf32> to vector<16x32xf32>
    %112 = vector.shape_cast %2 : vector<4x32xf32> to vector<4x1x32xf32>
    %113 = vector.shape_cast %21 : vector<16x32xf32> to vector<1x16x32xf32>
    %114 = vector.broadcast %112 : vector<4x1x32xf32> to vector<4x16x32xf32>
    %115 = vector.broadcast %113 : vector<1x16x32xf32> to vector<4x16x32xf32>
    %116 = arith.mulf %114, %115 : vector<4x16x32xf32>
    %117 = vector.shape_cast %116 : vector<4x16x32xf32> to vector<64x32xf32>
    %118 = vector.shape_cast %2 : vector<4x32xf32> to vector<4x1x32xf32>
    %119 = vector.shape_cast %22 : vector<16x32xf32> to vector<1x16x32xf32>
    %120 = vector.broadcast %118 : vector<4x1x32xf32> to vector<4x16x32xf32>
    %121 = vector.broadcast %119 : vector<1x16x32xf32> to vector<4x16x32xf32>
    %122 = arith.mulf %120, %121 : vector<4x16x32xf32>
    %123 = vector.shape_cast %122 : vector<4x16x32xf32> to vector<64x32xf32>
    %cst_32 = arith.constant dense<0.000000e+00> : vector<16x64xf32>
    %124 = tpu.matmul %111, %117, %cst_32 {dimension_numbers = #tpu.dot_dimension_numbers<[1], [1], [0], [0], [0, 0, 1, 0], [], []>} : vector<16x32xf32>, vector<64x32xf32>, vector<16x64xf32> -> vector<16x64xf32>
    %125 = arith.addf %124, %4 : vector<16x64xf32>
    %cst_33 = arith.constant 0.353553385 : f32
    %126 = vector.broadcast %cst_33 : f32 to vector<16x64xf32>
    %127 = arith.mulf %125, %126 : vector<16x64xf32>
    %128 = vector.extract_strided_slice %127 {offsets = [0, 0], sizes = [16, 16], strides = [1, 1]} : vector<16x64xf32> to vector<16x16xf32>
    %cst_34 = arith.constant dense<0xFF800000> : vector<16xf32>
    %129 = vector.multi_reduction <maximumf>, %128, %cst_34 [1] : vector<16x16xf32> to vector<16xf32>
    %130 = vector.shape_cast %129 : vector<16xf32> to vector<16x1xf32>
    %131 = vector.broadcast %130 : vector<16x1xf32> to vector<16x16xf32>
    %132 = arith.subf %128, %131 : vector<16x16xf32>
    %133 = math.exp %132 : vector<16x16xf32>
    %cst_35 = arith.constant dense<0.000000e+00> : vector<16xf32>
    %134 = vector.multi_reduction <add>, %133, %cst_35 [1] : vector<16x16xf32> to vector<16xf32>
    %135 = vector.shape_cast %134 : vector<16xf32> to vector<16x1xf32>
    %136 = vector.broadcast %135 : vector<16x1xf32> to vector<16x16xf32>
    %137 = arith.divf %133, %136 : vector<16x16xf32>
    %138 = vector.extract_strided_slice %127 {offsets = [0, 16], sizes = [16, 16], strides = [1, 1]} : vector<16x64xf32> to vector<16x16xf32>
    %cst_36 = arith.constant dense<0xFF800000> : vector<16xf32>
    %139 = vector.multi_reduction <maximumf>, %138, %cst_36 [1] : vector<16x16xf32> to vector<16xf32>
    %140 = vector.shape_cast %139 : vector<16xf32> to vector<16x1xf32>
    %141 = vector.broadcast %140 : vector<16x1xf32> to vector<16x16xf32>
    %142 = arith.subf %138, %141 : vector<16x16xf32>
    %143 = math.exp %142 : vector<16x16xf32>
    %cst_37 = arith.constant dense<0.000000e+00> : vector<16xf32>
    %144 = vector.multi_reduction <add>, %143, %cst_37 [1] : vector<16x16xf32> to vector<16xf32>
    %145 = vector.shape_cast %144 : vector<16xf32> to vector<16x1xf32>
    %146 = vector.broadcast %145 : vector<16x1xf32> to vector<16x16xf32>
    %147 = arith.divf %143, %146 : vector<16x16xf32>
    %148 = vector.extract_strided_slice %127 {offsets = [0, 32], sizes = [16, 16], strides = [1, 1]} : vector<16x64xf32> to vector<16x16xf32>
    %cst_38 = arith.constant dense<0xFF800000> : vector<16xf32>
    %149 = vector.multi_reduction <maximumf>, %148, %cst_38 [1] : vector<16x16xf32> to vector<16xf32>
    %150 = vector.shape_cast %149 : vector<16xf32> to vector<16x1xf32>
    %151 = vector.broadcast %150 : vector<16x1xf32> to vector<16x16xf32>
    %152 = arith.subf %148, %151 : vector<16x16xf32>
    %153 = math.exp %152 : vector<16x16xf32>
    %cst_39 = arith.constant dense<0.000000e+00> : vector<16xf32>
    %154 = vector.multi_reduction <add>, %153, %cst_39 [1] : vector<16x16xf32> to vector<16xf32>
    %155 = vector.shape_cast %154 : vector<16xf32> to vector<16x1xf32>
    %156 = vector.broadcast %155 : vector<16x1xf32> to vector<16x16xf32>
    %157 = arith.divf %153, %156 : vector<16x16xf32>
    %158 = vector.extract_strided_slice %127 {offsets = [0, 48], sizes = [16, 16], strides = [1, 1]} : vector<16x64xf32> to vector<16x16xf32>
    %cst_40 = arith.constant dense<0xFF800000> : vector<16xf32>
    %159 = vector.multi_reduction <maximumf>, %158, %cst_40 [1] : vector<16x16xf32> to vector<16xf32>
    %160 = vector.shape_cast %159 : vector<16xf32> to vector<16x1xf32>
    %161 = vector.broadcast %160 : vector<16x1xf32> to vector<16x16xf32>
    %162 = arith.subf %158, %161 : vector<16x16xf32>
    %163 = math.exp %162 : vector<16x16xf32>
    %cst_41 = arith.constant dense<0.000000e+00> : vector<16xf32>
    %164 = vector.multi_reduction <add>, %163, %cst_41 [1] : vector<16x16xf32> to vector<16xf32>
    %165 = vector.shape_cast %164 : vector<16xf32> to vector<16x1xf32>
    %166 = vector.broadcast %165 : vector<16x1xf32> to vector<16x16xf32>
    %167 = arith.divf %163, %166 : vector<16x16xf32>
    %168 = tpu.concatenate %137, %147, %157, %167 in 1 : vector<16x16xf32>, vector<16x16xf32>, vector<16x16xf32>, vector<16x16xf32> -> vector<16x64xf32>
    %cst_42 = arith.constant dense<0.000000e+00> : vector<16x32xf32>
    %169 = tpu.matmul %168, %123, %cst_42 {dimension_numbers = #tpu.dot_dimension_numbers<[1], [0], [0], [1], [0, 0, 1, 1], [], []>} : vector<16x64xf32>, vector<64x32xf32>, vector<16x32xf32> -> vector<16x32xf32>
    %c32_43 = arith.constant 32 : index
    %c0_44 = arith.constant 0 : index
    %170 = vector.load %arg1[%c32_43, %c0_44] : memref<144x128xf32, #tpu.memory_space<vmem>>, vector<32x128xf32>
    %cst_45 = arith.constant dense<0.000000e+00> : vector<16x128xf32>
    %171 = tpu.matmul %169, %170, %cst_45 {dimension_numbers = #tpu.dot_dimension_numbers<[1], [0], [0], [1], [0, 0, 1, 1], [], []>} : vector<16x32xf32>, vector<32x128xf32>, vector<16x128xf32> -> vector<16x128xf32>
    %172 = vector.extract_strided_slice %171 {offsets = [0, 96], sizes = [16, 32], strides = [1, 1]} : vector<16x128xf32> to vector<16x32xf32>
    %173 = vector.broadcast %9 : vector<1x32xf32> to vector<16x32xf32>
    %174 = arith.addf %172, %173 : vector<16x32xf32>
    %175 = arith.addf %174, %108 : vector<16x32xf32>
    %cst_46 = arith.constant dense<0.000000e+00> : vector<16xf32>
    %176 = vector.multi_reduction <add>, %175, %cst_46 [1] : vector<16x32xf32> to vector<16xf32>
    %177 = vector.shape_cast %176 : vector<16xf32> to vector<16x1xf32>
    %cst_47 = arith.constant 3.200000e+01 : f32
    %178 = vector.broadcast %cst_47 : f32 to vector<16x1xf32>
    %179 = arith.divf %177, %178 : vector<16x1xf32>
    %180 = vector.broadcast %179 : vector<16x1xf32> to vector<16x32xf32>
    %181 = arith.subf %175, %180 : vector<16x32xf32>
    %182 = arith.mulf %181, %181 : vector<16x32xf32>
    %cst_48 = arith.constant dense<0.000000e+00> : vector<16xf32>
    %183 = vector.multi_reduction <add>, %182, %cst_48 [1] : vector<16x32xf32> to vector<16xf32>
    %184 = vector.shape_cast %183 : vector<16xf32> to vector<16x1xf32>
    %cst_49 = arith.constant 3.200000e+01 : f32
    %185 = vector.broadcast %cst_49 : f32 to vector<16x1xf32>
    %186 = arith.divf %184, %185 : vector<16x1xf32>
    %187 = vector.broadcast %179 : vector<16x1xf32> to vector<16x32xf32>
    %188 = arith.subf %175, %187 : vector<16x32xf32>
    %cst_50 = arith.constant 9.99999974E-6 : f32
    %189 = vector.broadcast %cst_50 : f32 to vector<16x1xf32>
    %190 = arith.addf %186, %189 : vector<16x1xf32>
    %191 = math.rsqrt %190 : vector<16x1xf32>
    %192 = vector.broadcast %191 : vector<16x1xf32> to vector<16x32xf32>
    %193 = arith.mulf %188, %192 : vector<16x32xf32>
    %194 = vector.broadcast %10 : vector<1x32xf32> to vector<16x32xf32>
    %195 = arith.mulf %193, %194 : vector<16x32xf32>
    %196 = vector.broadcast %11 : vector<1x32xf32> to vector<16x32xf32>
    %197 = arith.addf %195, %196 : vector<16x32xf32>
    %c64 = arith.constant 64 : index
    %c0_51 = arith.constant 0 : index
    %198 = vector.load %arg1[%c64, %c0_51] : memref<144x128xf32, #tpu.memory_space<vmem>>, vector<32x128xf32>
    %cst_52 = arith.constant dense<0.000000e+00> : vector<16x128xf32>
    %199 = tpu.matmul %197, %198, %cst_52 {dimension_numbers = #tpu.dot_dimension_numbers<[1], [0], [0], [1], [0, 0, 1, 1], [], []>} : vector<16x32xf32>, vector<32x128xf32>, vector<16x128xf32> -> vector<16x128xf32>
    %200 = vector.extract_strided_slice %199 {offsets = [0, 0], sizes = [16, 64], strides = [1, 1]} : vector<16x128xf32> to vector<16x64xf32>
    %201 = vector.broadcast %13 : vector<1x64xf32> to vector<16x64xf32>
    %202 = arith.addf %200, %201 : vector<16x64xf32>
    %cst_53 = arith.constant 0.000000e+00 : f32
    %203 = vector.broadcast %cst_53 : f32 to vector<16x64xf32>
    %204 = arith.maximumf %202, %203 : vector<16x64xf32>
    %c64_54 = arith.constant 64 : index
    %c64_55 = arith.constant 64 : index
    %205 = vector.load %arg1[%c64_54, %c64_55] : memref<144x128xf32, #tpu.memory_space<vmem>>, vector<32x64xf32>
    %cst_56 = arith.constant dense<0.000000e+00> : vector<16x32xf32>
    %206 = tpu.matmul %204, %205, %cst_56 {dimension_numbers = #tpu.dot_dimension_numbers<[1], [1], [0], [0], [0, 0, 1, 0], [], []>} : vector<16x64xf32>, vector<32x64xf32>, vector<16x32xf32> -> vector<16x32xf32>
    %207 = vector.broadcast %12 : vector<1x32xf32> to vector<16x32xf32>
    %208 = arith.addf %206, %207 : vector<16x32xf32>
    %209 = arith.addf %208, %197 : vector<16x32xf32>
    %cst_57 = arith.constant dense<0.000000e+00> : vector<16xf32>
    %210 = vector.multi_reduction <add>, %209, %cst_57 [1] : vector<16x32xf32> to vector<16xf32>
    %211 = vector.shape_cast %210 : vector<16xf32> to vector<16x1xf32>
    %cst_58 = arith.constant 3.200000e+01 : f32
    %212 = vector.broadcast %cst_58 : f32 to vector<16x1xf32>
    %213 = arith.divf %211, %212 : vector<16x1xf32>
    %214 = vector.broadcast %213 : vector<16x1xf32> to vector<16x32xf32>
    %215 = arith.subf %209, %214 : vector<16x32xf32>
    %216 = arith.mulf %215, %215 : vector<16x32xf32>
    %cst_59 = arith.constant dense<0.000000e+00> : vector<16xf32>
    %217 = vector.multi_reduction <add>, %216, %cst_59 [1] : vector<16x32xf32> to vector<16xf32>
    %218 = vector.shape_cast %217 : vector<16xf32> to vector<16x1xf32>
    %cst_60 = arith.constant 3.200000e+01 : f32
    %219 = vector.broadcast %cst_60 : f32 to vector<16x1xf32>
    %220 = arith.divf %218, %219 : vector<16x1xf32>
    %221 = vector.broadcast %213 : vector<16x1xf32> to vector<16x32xf32>
    %222 = arith.subf %209, %221 : vector<16x32xf32>
    %cst_61 = arith.constant 9.99999974E-6 : f32
    %223 = vector.broadcast %cst_61 : f32 to vector<16x1xf32>
    %224 = arith.addf %220, %223 : vector<16x1xf32>
    %225 = math.rsqrt %224 : vector<16x1xf32>
    %226 = vector.broadcast %225 : vector<16x1xf32> to vector<16x32xf32>
    %227 = arith.mulf %222, %226 : vector<16x32xf32>
    %228 = vector.broadcast %10 : vector<1x32xf32> to vector<16x32xf32>
    %229 = arith.mulf %227, %228 : vector<16x32xf32>
    %230 = vector.broadcast %11 : vector<1x32xf32> to vector<16x32xf32>
    %231 = arith.addf %229, %230 : vector<16x32xf32>
    %c0_62 = arith.constant 0 : index
    %c0_63 = arith.constant 0 : index
    %232 = vector.load %arg2[%c0_62, %c0_63] : memref<16x32xf32, #tpu.memory_space<vmem>>, vector<16x32xf32>
    tpu.vector_store %arg2[%c0_62, %c0_63], %231 {strides = array<i32>} : memref<16x32xf32, #tpu.memory_space<vmem>>, vector<16x32xf32>,
    return
  }
}

</mosaic_0001>

<llo_original>
// kernel: run.1
$region0: #{run.1}
  #allocation0 [shape = 'u32[]', space=smem, size = 0x4, offset = 0x4, fixed_abs, tag = 'smem constant byte address 0x4 - core index']
  #allocation1 [shape = 'u32[144,128]{1,0:T(1,128)}', space=vmem, size = 0x12000, scoped, tag = 'internal scratch']
  %s0 = inlined_call_operand.vmem [shape: f32[48,32], index: 0, kind: input, shape index: {}]
  %s1 = inlined_call_operand.hbm [shape: f32[144,128], index: 1, kind: input, shape index: {}]
  %s2 = inlined_call_operand.hbm [shape: f32[16,32], index: 2, kind: output, shape index: {}]
  %s3 = sld [smem:[#allocation0]]
  $region22: #{run.1} parent=0
    _
  %s5 = ssub.s32 1, %s3
  %s6 = scalar_select 0, %s5, %s3
  $region1: #{run.1} parent=0
    #allocation2 [shape = 'u8[73728]{0}', space=vmem, size = 0x12000, scoped, tag = 'input window, operand 1, single buffered']
    #allocation3 [shape = 's32[1]{0}', space=sflag, size = 0x4, scoped, tag = 'scoped memory for run.1']
    #allocation4 [shape = 's32[1]{0}', space=sflag, size = 0x4, scoped, tag = 'scoped memory for run.1']
    #allocation5 [shape = 'u8[8192]{0}', space=vmem, size = 0x2000, scoped, tag = 'output window, operand 0, single buffered']
    %7 = vsyncpa [#allocation3], 0
    %8 = vsyncpa [#allocation4], 0
    // Predicated region
    $region2: #{run.1} parent=1 // pred_check
      _
    $region3: #{run.1} parent=1 // pred_check_branch
      %10 = sbr.rel (0) target = $region5
    $region4: #{run.1} parent=1 // pred_region
      _
    $region5: #{run.1} parent=1 // pred_fallthru
      _
    // Predicated region
    $region6: #{run.1} parent=1 // pred_check
      _
    $region7: #{run.1} parent=1 // pred_check_branch
      %12 = sbr.rel (0) target = $region9
    $region8: #{run.1} parent=1 // pred_region
      %s14 = ssub.s32 2304, 2304
      %15 = vsyncadd [#allocation3], %s14
      %s16 = sshll.u32 [#allocation2], 4
      %s17 = int_to_ptr.vmem [resolvable:$true] %s16
      %22 = dma.hbm_to_vmem [thread:$0]  %s1, 2304, %s17, [#allocation3], 128, 128, 8
    $region9: #{run.1} parent=1 // pred_fallthru
      _
    // Predicated region
    $region10: #{run.1} parent=1 // pred_check
      _
    $region11: #{run.1} parent=1 // pred_check_branch
      %24 = sbr.rel (0) target = $region13
    $region12: #{run.1} parent=1 // pred_region
      %25 = dma.done [#allocation3], 2304
    $region13: #{run.1} parent=1 // pred_fallthru
      _
    %v26 = vld [vmem:[%s0] sm:$0xff]
    %v27 = vld [vmem:[%s0 + $0x8] sm:$0xff]
    %v28 = vld [vmem:[%s0 + $0x10] sm:$0xff]
    %v29 = vld [vmem:[%s0 + $0x18] sm:$0xff]
    %v30 = vld [vmem:[%s0 + $0x20] sm:$0xff]
    %v31 = vld [vmem:[%s0 + $0x28] sm:$0xff]
    %v32 = vld [vmem:[#allocation2 + $0x88] sm:$0xf]
    %v33 = vld [vmem:[#allocation2 + $0x60] sm:$0xff]
    %v34 = vld [vmem:[#allocation2 + $0x68] sm:$0xff]
    %v35 = vld [vmem:[#allocation2 + $0x70] sm:$0xff]
    %v36 = vld [vmem:[#allocation2 + $0x78] sm:$0xff]
    %v37 = vld [vmem:[#allocation2 + $0x80] sm:$0xff]
    %v38 = vld [vmem:[#allocation2] sm:$0xff]
    %v39 = vld [vmem:[#allocation2 + $0x8] sm:$0xff]
    %v40 = vld [vmem:[#allocation2 + $0x10] sm:$0xff]
    %v41 = vld [vmem:[#allocation2 + $0x18] sm:$0xff]
    %vm42 = vcmask 261120
    %v44 = vsel %vm42, %v26, 0
    %v47 = vsel %vm42, %v27, 0
    %49 = vmatprep.subr.mxu0 0.0
    %50 = vmatpush1.msra.mxu0 %v38
    %51 = vmatprep.subr.mxu0 0.0
    %52 = vmatpush1.msra.mxu0 %v39
    %53 = vmatprep.subr.mxu0 0.0
    %54 = vmatpush1.msra.mxu0 %v40
    %55 = vmatprep.subr.mxu0 0.0
    %56 = vmatpush1.msra.mxu0 %v41
    %57 = vmatprep.subr.mxu0 0.0
    %58 = vmatpush1.msra.mxu0 0.0
    %59 = vmatprep.subr.mxu0 0.0
    %60 = vmatpush1.msra.mxu0 0.0
    %61 = vmatprep.subr.mxu0 0.0
    %62 = vmatpush1.msra.mxu0 0.0
    %63 = vmatprep.subr.mxu0 0.0
    %64 = vmatpush1.msra.mxu0 0.0
    %65 = vmatprep.subr.mxu0 0.0
    %66 = vmatpush1.msra.mxu0 0.0
    %67 = vmatprep.subr.mxu0 0.0
    %68 = vmatpush1.msra.mxu0 0.0
    %69 = vmatprep.subr.mxu0 0.0
    %70 = vmatpush1.msra.mxu0 0.0
    %71 = vmatprep.subr.mxu0 0.0
    %72 = vmatpush1.msra.mxu0 0.0
    %73 = vmatprep.subr.mxu0 0.0
    %74 = vmatpush1.msra.mxu0 0.0
    %75 = vmatprep.subr.mxu0 0.0
    %76 = vmatpush1.msra.mxu0 0.0
    %77 = vmatprep.subr.mxu0 0.0
    %78 = vmatpush1.msra.mxu0 0.0
    %79 = vmatprep.subr.mxu0 0.0
    %80 = vmatpush1.msra.mxu0 0.0
    %81 = vmatprep.subr.mxu0 0.0
    %82 = vmatpush1.msra.mxu0 0.0
    %83 = vmatprep.subr.mxu0 0.0
    %84 = vmatpush1.msra.mxu0 0.0
    %85 = vmatprep.subr.mxu0 0.0
    %86 = vmatpush1.msra.mxu0 0.0
    %87 = vmatprep.subr.mxu0 0.0
    %88 = vmatpush1.msra.mxu0 0.0
    %89 = vmatprep.subr.mxu0 0.0
    %90 = vmatpush1.msra.mxu0 0.0
    %91 = vmatprep.subr.mxu0 0.0
    %92 = vmatpush1.msra.mxu0 0.0
    %93 = vmatprep.subr.mxu0 0.0
    %94 = vmatpush1.msra.mxu0 0.0
    %95 = vmatprep.subr.mxu0 0.0
    %96 = vmatpush1.msra.mxu0 0.0
    %97 = vmatprep.subr.mxu0 0.0
    %98 = vmatpush1.msra.mxu0 0.0
    %99 = vmatprep.subr.mxu0 0.0
    %100 = vmatpush1.msra.mxu0 0.0
    %101 = vmatprep.subr.mxu0 0.0
    %102 = vmatpush1.msra.mxu0 0.0
    %103 = vmatprep.subr.mxu0 0.0
    %104 = vmatpush1.msra.mxu0 0.0
    %105 = vmatprep.subr.mxu0 0.0
    %106 = vmatpush1.msra.mxu0 0.0
    %107 = vmatprep.subr.mxu0 0.0
    %108 = vmatpush1.msra.mxu0 0.0
    %109 = vmatprep.subr.mxu0 0.0
    %110 = vmatpush1.msra.mxu0 0.0
    %111 = vmatprep.subr.mxu0 0.0
    %112 = vmatpush1.msra.mxu0 0.0
    %113 = vmatprep.mubr.f32.mxu0 0.0
    %114 = vmatmul.mubr.f32.gmra.mrb[0].mxu0 %v44
    %v115 = vpop.f32.mrb[0].mxu0
    %v116 = vadd.f32 0.0, %v115
    %v117 = vpop.f32.mrb[0].mxu0
    %118 = vmatprep.mubr.f32.mxu0 0.0
    %119 = vmatmul.mubr.f32.gmra.mrb[0].mxu0 %v47
    %v120 = vpop.f32.mrb[0].mxu0
    %v121 = vadd.f32 0.0, %v120
    %v122 = vpop.f32.mrb[0].mxu0
    %123 = vdwg.mxu0
    %v124 = vld [vmem:[#allocation2 + $0x20] sm:$0xff]
    %v125 = vld [vmem:[#allocation2 + $0x28] sm:$0xff]
    %v126 = vld [vmem:[#allocation2 + $0x30] sm:$0xff]
    %v127 = vld [vmem:[#allocation2 + $0x38] sm:$0xff]
    %v129 = vsel %vm42, %v28, 0
    %v132 = vsel %vm42, %v29, 0
    %v135 = vsel %vm42, %v30, 0
    %v138 = vsel %vm42, %v31, 0
    %140 = vmatprep.subr.mxu0 0.0
    %141 = vmatpush1.msra.mxu0 %v124
    %142 = vmatprep.subr.mxu0 0.0
    %143 = vmatpush1.msra.mxu0 %v125
    %144 = vmatprep.subr.mxu0 0.0
    %145 = vmatpush1.msra.mxu0 %v126
    %146 = vmatprep.subr.mxu0 0.0
    %147 = vmatpush1.msra.mxu0 %v127
    %148 = vmatprep.subr.mxu0 0.0
    %149 = vmatpush1.msra.mxu0 0.0
    %150 = vmatprep.subr.mxu0 0.0
    %151 = vmatpush1.msra.mxu0 0.0
    %152 = vmatprep.subr.mxu0 0.0
    %153 = vmatpush1.msra.mxu0 0.0
    %154 = vmatprep.subr.mxu0 0.0
    %155 = vmatpush1.msra.mxu0 0.0
    %156 = vmatprep.subr.mxu0 0.0
    %157 = vmatpush1.msra.mxu0 0.0
    %158 = vmatprep.subr.mxu0 0.0
    %159 = vmatpush1.msra.mxu0 0.0
    %160 = vmatprep.subr.mxu0 0.0
    %161 = vmatpush1.msra.mxu0 0.0
    %162 = vmatprep.subr.mxu0 0.0
    %163 = vmatpush1.msra.mxu0 0.0
    %164 = vmatprep.subr.mxu0 0.0
    %165 = vmatpush1.msra.mxu0 0.0
    %166 = vmatprep.subr.mxu0 0.0
    %167 = vmatpush1.msra.mxu0 0.0
    %168 = vmatprep.subr.mxu0 0.0
    %169 = vmatpush1.msra.mxu0 0.0
    %170 = vmatprep.subr.mxu0 0.0
    %171 = vmatpush1.msra.mxu0 0.0
    %172 = vmatprep.subr.mxu0 0.0
    %173 = vmatpush1.msra.mxu0 0.0
    %174 = vmatprep.subr.mxu0 0.0
    %175 = vmatpush1.msra.mxu0 0.0
    %176 = vmatprep.subr.mxu0 0.0
    %177 = vmatpush1.msra.mxu0 0.0
    %178 = vmatprep.subr.mxu0 0.0
    %179 = vmatpush1.msra.mxu0 0.0
    %180 = vmatprep.subr.mxu0 0.0
    %181 = vmatpush1.msra.mxu0 0.0
    %182 = vmatprep.subr.mxu0 0.0
    %183 = vmatpush1.msra.mxu0 0.0
    %184 = vmatprep.subr.mxu0 0.0
    %185 = vmatpush1.msra.mxu0 0.0
    %186 = vmatprep.subr.mxu0 0.0
    %187 = vmatpush1.msra.mxu0 0.0
    %188 = vmatprep.subr.mxu0 0.0
    %189 = vmatpush1.msra.mxu0 0.0
    %190 = vmatprep.subr.mxu0 0.0
    %191 = vmatpush1.msra.mxu0 0.0
    %192 = vmatprep.subr.mxu0 0.0
    %193 = vmatpush1.msra.mxu0 0.0
    %194 = vmatprep.subr.mxu0 0.0
    %195 = vmatpush1.msra.mxu0 0.0
    %196 = vmatprep.subr.mxu0 0.0
    %197 = vmatpush1.msra.mxu0 0.0
    %198 = vmatprep.subr.mxu0 0.0
    %199 = vmatpush1.msra.mxu0 0.0
    %200 = vmatprep.subr.mxu0 0.0
    %201 = vmatpush1.msra.mxu0 0.0
    %202 = vmatprep.subr.mxu0 0.0
    %203 = vmatpush1.msra.mxu0 0.0
    %204 = vmatprep.mubr.f32.mxu0 0.0
    %205 = vmatmul.mubr.f32.gmra.mrb[0].mxu0 %v129
    %v206 = vpop.f32.mrb[0].mxu0
    %v207 = vadd.f32 0.0, %v206
    %v208 = vpop.f32.mrb[0].mxu0
    %209 = vmatprep.mubr.f32.mxu0 0.0
    %210 = vmatmul.mubr.f32.gmra.mrb[0].mxu0 %v132
    %v211 = vpop.f32.mrb[0].mxu0
    %v212 = vadd.f32 0.0, %v211
    %v213 = vpop.f32.mrb[0].mxu0
    %214 = vmatprep.mubr.f32.mxu0 0.0
    %215 = vmatmul.mubr.f32.gmra.mrb[0].mxu0 %v135
    %v216 = vpop.f32.mrb[0].mxu0
    %v217 = vadd.f32 0.0, %v216
    %v218 = vpop.f32.mrb[0].mxu0
    %219 = vmatprep.mubr.f32.mxu0 0.0
    %220 = vmatmul.mubr.f32.gmra.mrb[0].mxu0 %v138
    %v221 = vpop.f32.mrb[0].mxu0
    %v222 = vadd.f32 0.0, %v221
    %v223 = vpop.f32.mrb[0].mxu0
    %224 = vdwg.mxu0
    %v227 = vunpack.c.l.s4 1966171168
    %v228 = vunpack.c.0.s8 %v227
    %v229 = vlaneseq
    %v230 = vshrl.u32 %v229, 7
    %v231 = vsub.s32 %v228, %v230
    %v232 = vrot.slane %v32, %v231
    %v233 = vcombine.high %v232, %v232
    %v235 = vunpack.c.l.s4 1966171168
    %v236 = vunpack.c.0.s8 %v235
    %v237 = vlaneseq
    %v238 = vshrl.u32 %v237, 7
    %v239 = vsub.s32 %v236, %v238
    %v240 = vrot.slane %v232, %v239
    %v242 = vunpack.c.l.s4 1966171168
    %v243 = vunpack.c.0.s8 %v242
    %v244 = vlaneseq
    %v245 = vshrl.u32 %v244, 7
    %v246 = vsub.s32 %v243, %v245
    %v247 = vrot.slane %v233, %v246
    %v248 = vcombine.high %v240, %v240
    %v249 = vcombine.high %v247, %v247
    %v250 = vlaneseq
    %v251 = vshrl.u32 %v250, 7
    %v252 = vsub.s32 0, %v251
    %v253 = vrot.slane %v240, %v252
    %v254 = vlaneseq
    %v255 = vshrl.u32 %v254, 7
    %v256 = vsub.s32 0, %v255
    %v257 = vrot.slane %v247, %v256
    %v258 = vlaneseq
    %v259 = vshrl.u32 %v258, 7
    %v260 = vsub.s32 0, %v259
    %v261 = vrot.slane %v248, %v260
    %v262 = vlaneseq
    %v263 = vshrl.u32 %v262, 7
    %v264 = vsub.s32 0, %v263
    %v265 = vrot.slane %v249, %v264
    %272 = vrot.lane.b32.xlu0 %v116, 96
    %v273 = vpop.permute.xlu0 %272
    %274 = vrot.lane.b32.xlu0 %v121, 96
    %v275 = vpop.permute.xlu0 %274
    %v278 = vmul.f32 %v253, %v273
    %v279 = vmul.f32 %v253, %v275
    %v280 = vmul.f32 %v257, %v273
    %v281 = vmul.f32 %v257, %v275
    %v282 = vmul.f32 %v261, %v273
    %v283 = vmul.f32 %v261, %v275
    %v284 = vmul.f32 %v265, %v273
    %v285 = vmul.f32 %v265, %v275
    %286 = vrot.lane.b32.xlu0 %v116, 64
    %v287 = vpop.permute.xlu0 %286
    %288 = vrot.lane.b32.xlu0 %v121, 64
    %v289 = vpop.permute.xlu0 %288
    %v292 = vmul.f32 %v253, %v287
    %v293 = vmul.f32 %v253, %v289
    %v294 = vmul.f32 %v257, %v287
    %v295 = vmul.f32 %v257, %v289
    %v296 = vmul.f32 %v261, %v287
    %v297 = vmul.f32 %v261, %v289
    %v298 = vmul.f32 %v265, %v287
    %v299 = vmul.f32 %v265, %v289
    %v300 = vsel %vm42, %v116, 0
    %v302 = vsel %vm42, %v121, 0
    %v305 = vsel %vm42, %v278, 0
    %v308 = vsel %vm42, %v279, 0
    %v311 = vsel %vm42, %v280, 0
    %v314 = vsel %vm42, %v281, 0
    %v317 = vsel %vm42, %v282, 0
    %v320 = vsel %vm42, %v283, 0
    %v323 = vsel %vm42, %v284, 0
    %v326 = vsel %vm42, %v285, 0
    %328 = vmatprep.subr.mxu0 0.0
    %329 = vmatpush1.xpose.msra.mxu0 %v305
    %330 = vmatprep.subr.mxu0 0.0
    %331 = vmatpush1.xpose.msra.mxu0 %v308
    %332 = vmatprep.subr.mxu0 0.0
    %333 = vmatpush1.xpose.msra.mxu0 %v311
    %334 = vmatprep.subr.mxu0 0.0
    %335 = vmatpush1.xpose.msra.mxu0 %v314
    %336 = vmatprep.subr.mxu0 0.0
    %337 = vmatpush1.xpose.msra.mxu0 %v317
    %338 = vmatprep.subr.mxu0 0.0
    %339 = vmatpush1.xpose.msra.mxu0 %v320
    %340 = vmatprep.subr.mxu0 0.0
    %341 = vmatpush1.xpose.msra.mxu0 %v323
    %342 = vmatprep.subr.mxu0 0.0
    %343 = vmatpush1.xpose.msra.mxu0 %v326
    %344 = vmatprep.subr.mxu0 0.0
    %345 = vmatpush1.xpose.msra.mxu0 0.0
    %346 = vmatprep.subr.mxu0 0.0
    %347 = vmatpush1.xpose.msra.mxu0 0.0
    %348 = vmatprep.subr.mxu0 0.0
    %349 = vmatpush1.xpose.msra.mxu0 0.0
    %350 = vmatprep.subr.mxu0 0.0
    %351 = vmatpush1.xpose.msra.mxu0 0.0
    %352 = vmatprep.subr.mxu0 0.0
    %353 = vmatpush1.xpose.msra.mxu0 0.0
    %354 = vmatprep.subr.mxu0 0.0
    %355 = vmatpush1.xpose.msra.mxu0 0.0
    %356 = vmatprep.subr.mxu0 0.0
    %357 = vmatpush1.xpose.msra.mxu0 0.0
    %358 = vmatprep.subr.mxu0 0.0
    %359 = vmatpush1.xpose.msra.mxu0 0.0
    %360 = vmatprep.subr.mxu0 0.0
    %361 = vmatpush1.xpose.msra.mxu0 0.0
    %362 = vmatprep.subr.mxu0 0.0
    %363 = vmatpush1.xpose.msra.mxu0 0.0
    %364 = vmatprep.subr.mxu0 0.0
    %365 = vmatpush1.xpose.msra.mxu0 0.0
    %366 = vmatprep.subr.mxu0 0.0
    %367 = vmatpush1.xpose.msra.mxu0 0.0
    %368 = vmatprep.subr.mxu0 0.0
    %369 = vmatpush1.xpose.msra.mxu0 0.0
    %370 = vmatprep.subr.mxu0 0.0
    %371 = vmatpush1.xpose.msra.mxu0 0.0
    %372 = vmatprep.subr.mxu0 0.0
    %373 = vmatpush1.xpose.msra.mxu0 0.0
    %374 = vmatprep.subr.mxu0 0.0
    %375 = vmatpush1.xpose.msra.mxu0 0.0
    %376 = vmatprep.subr.mxu0 0.0
    %377 = vmatpush1.xpose.msra.mxu0 0.0
    %378 = vmatprep.subr.mxu0 0.0
    %379 = vmatpush1.xpose.msra.mxu0 0.0
    %380 = vmatprep.subr.mxu0 0.0
    %381 = vmatpush1.xpose.msra.mxu0 0.0
    %382 = vmatprep.subr.mxu0 0.0
    %383 = vmatpush1.xpose.msra.mxu0 0.0
    %384 = vmatprep.subr.mxu0 0.0
    %385 = vmatpush1.xpose.msra.mxu0 0.0
    %386 = vmatprep.subr.mxu0 0.0
    %387 = vmatpush1.xpose.msra.mxu0 0.0
    %388 = vmatprep.subr.mxu0 0.0
    %389 = vmatpush1.xpose.msra.mxu0 0.0
    %390 = vmatprep.subr.mxu0 0.0
    %391 = vmatpush1.xpose.msra.mxu0 0.0
    %392 = vmatprep.mubr.f32.mxu0 0.0
    %393 = vmatmul.mubr.f32.gmra.mrb[0].mxu0 %v300
    %v394 = vpop.f32.mrb[0].mxu0
    %v395 = vadd.f32 %v33, %v394
    %v396 = vpop.f32.mrb[0].mxu0
    %397 = vmatprep.mubr.f32.mxu0 0.0
    %398 = vmatmul.mubr.f32.gmra.mrb[0].mxu0 %v302
    %v399 = vpop.f32.mrb[0].mxu0
    %v400 = vadd.f32 %v34, %v399
    %v401 = vpop.f32.mrb[0].mxu0
    %402 = vdwg.mxu0
    %v403 = vmul.f32 %v395, 0.35355338
    %v404 = vmul.f32 %v400, 0.35355338
    %vm405 = vcmask 130048
    %v406 = vsel %vm405, %v403, -inf
    %407 = vmax.xlane.f32.xlu0 %v406
    %v408 = vpop.xlane.xlu0 %407
    %v409 = vsel %vm405, %v404, -inf
    %410 = vmax.xlane.f32.xlu0 %v409
    %v411 = vpop.xlane.xlu0 %410
    %v412 = vsub.f32 %v403, %v408
    %v413 = vsub.f32 %v404, %v411
    %v414 = vmul.f32 %v412, 1.442695
    %v415 = vpow.pop %v414
    %v416 = vmul.f32 %v413, 1.442695
    %v417 = vpow.pop %v416
    %v418 = vsel %vm405, %v415, 0.0
    %419 = vadd.xlane.f32.xlu0 %v418
    %v420 = vpop.xlane.xlu0 %419
    %v421 = vsel %vm405, %v417, 0.0
    %422 = vadd.xlane.f32.xlu0 %v421
    %v423 = vpop.xlane.xlu0 %422
    %v424 = vrcp.pop %v420
    %v425 = vmul.f32 %v415, %v424
    %v426 = vrcp.pop %v423
    %v427 = vmul.f32 %v417, %v426
    %vm428 = vcmask 261248
    %v429 = vsel %vm428, %v403, -inf
    %430 = vmax.xlane.f32.xlu0 %v429
    %v431 = vpop.xlane.xlu0 %430
    %v432 = vsel %vm428, %v404, -inf
    %433 = vmax.xlane.f32.xlu0 %v432
    %v434 = vpop.xlane.xlu0 %433
    %v435 = vsub.f32 %v403, %v431
    %v436 = vsub.f32 %v404, %v434
    %v437 = vmul.f32 %v435, 1.442695
    %v438 = vpow.pop %v437
    %v439 = vmul.f32 %v436, 1.442695
    %v440 = vpow.pop %v439
    %443 = vrot.lane.b32.xlu0 %v438, 112
    %v444 = vpop.permute.xlu0 %443
    %445 = vrot.lane.b32.xlu0 %v440, 112
    %v446 = vpop.permute.xlu0 %445
    %v449 = vsel %vm405, %v444, 0.0
    %450 = vadd.xlane.f32.xlu0 %v449
    %v451 = vpop.xlane.xlu0 %450
    %v452 = vsel %vm405, %v446, 0.0
    %453 = vadd.xlane.f32.xlu0 %v452
    %v454 = vpop.xlane.xlu0 %453
    %v455 = vrcp.pop %v451
    %v456 = vmul.f32 %v438, %v455
    %v457 = vrcp.pop %v454
    %v458 = vmul.f32 %v440, %v457
    %vm459 = vcmask 392448
    %v460 = vsel %vm459, %v403, -inf
    %461 = vmax.xlane.f32.xlu0 %v460
    %v462 = vpop.xlane.xlu0 %461
    %v463 = vsel %vm459, %v404, -inf
    %464 = vmax.xlane.f32.xlu0 %v463
    %v465 = vpop.xlane.xlu0 %464
    %v466 = vsub.f32 %v403, %v462
    %v467 = vsub.f32 %v404, %v465
    %v468 = vmul.f32 %v466, 1.442695
    %v469 = vpow.pop %v468
    %v470 = vmul.f32 %v467, 1.442695
    %v471 = vpow.pop %v470
    %474 = vrot.lane.b32.xlu0 %v469, 96
    %v475 = vpop.permute.xlu0 %474
    %476 = vrot.lane.b32.xlu0 %v471, 96
    %v477 = vpop.permute.xlu0 %476
    %v480 = vsel %vm405, %v475, 0.0
    %481 = vadd.xlane.f32.xlu0 %v480
    %v482 = vpop.xlane.xlu0 %481
    %v483 = vsel %vm405, %v477, 0.0
    %484 = vadd.xlane.f32.xlu0 %v483
    %v485 = vpop.xlane.xlu0 %484
    %v486 = vrcp.pop %v482
    %v487 = vmul.f32 %v469, %v486
    %v488 = vrcp.pop %v485
    %v489 = vmul.f32 %v471, %v488
    %vm490 = vcmask 523648
    %v491 = vsel %vm490, %v403, -inf
    %492 = vmax.xlane.f32.xlu0 %v491
    %v493 = vpop.xlane.xlu0 %492
    %v494 = vsel %vm490, %v404, -inf
    %495 = vmax.xlane.f32.xlu0 %v494
    %v496 = vpop.xlane.xlu0 %495
    %v497 = vsub.f32 %v403, %v493
    %v498 = vsub.f32 %v404, %v496
    %v499 = vmul.f32 %v497, 1.442695
    %v500 = vpow.pop %v499
    %v501 = vmul.f32 %v498, 1.442695
    %v502 = vpow.pop %v501
    %505 = vrot.lane.b32.xlu0 %v500, 80
    %v506 = vpop.permute.xlu0 %505
    %507 = vrot.lane.b32.xlu0 %v502, 80
    %v508 = vpop.permute.xlu0 %507
    %v511 = vsel %vm405, %v506, 0.0
    %512 = vadd.xlane.f32.xlu0 %v511
    %v513 = vpop.xlane.xlu0 %512
    %v514 = vsel %vm405, %v508, 0.0
    %515 = vadd.xlane.f32.xlu0 %v514
    %v516 = vpop.xlane.xlu0 %515
    %v517 = vrcp.pop %v513
    %v518 = vmul.f32 %v500, %v517
    %v519 = vrcp.pop %v516
    %v520 = vmul.f32 %v502, %v519
    %v521 = vsel %vm405, %v425, %v456
    %v522 = vsel %vm405, %v427, %v458
    %v523 = vsel %vm42, %v521, %v487
    %v524 = vsel %vm42, %v522, %v489
    %vm525 = vcmask 392192
    %v526 = vsel %vm525, %v523, %v518
    %v527 = vsel %vm525, %v524, %v520
    %vm528 = vcmask 523264
    %v530 = vsel %vm528, %v526, 0
    %v533 = vsel %vm528, %v527, 0
    %535 = vmatprep.subr.mxu0 0.0
    %536 = vmatpush1.msra.mxu0 %v292
    %537 = vmatprep.subr.mxu0 0.0
    %538 = vmatpush1.msra.mxu0 %v293
    %539 = vmatprep.subr.mxu0 0.0
    %540 = vmatpush1.msra.mxu0 %v294
    %541 = vmatprep.subr.mxu0 0.0
    %542 = vmatpush1.msra.mxu0 %v295
    %543 = vmatprep.subr.mxu0 0.0
    %544 = vmatpush1.msra.mxu0 %v296
    %545 = vmatprep.subr.mxu0 0.0
    %546 = vmatpush1.msra.mxu0 %v297
    %547 = vmatprep.subr.mxu0 0.0
    %548 = vmatpush1.msra.mxu0 %v298
    %549 = vmatprep.subr.mxu0 0.0
    %550 = vmatpush1.msra.mxu0 %v299
    %551 = vmatprep.subr.mxu0 0.0
    %552 = vmatpush1.msra.mxu0 0.0
    %553 = vmatprep.subr.mxu0 0.0
    %554 = vmatpush1.msra.mxu0 0.0
    %555 = vmatprep.subr.mxu0 0.0
    %556 = vmatpush1.msra.mxu0 0.0
    %557 = vmatprep.subr.mxu0 0.0
    %558 = vmatpush1.msra.mxu0 0.0
    %559 = vmatprep.subr.mxu0 0.0
    %560 = vmatpush1.msra.mxu0 0.0
    %561 = vmatprep.subr.mxu0 0.0
    %562 = vmatpush1.msra.mxu0 0.0
    %563 = vmatprep.subr.mxu0 0.0
    %564 = vmatpush1.msra.mxu0 0.0
    %565 = vmatprep.subr.mxu0 0.0
    %566 = vmatpush1.msra.mxu0 0.0
    %567 = vmatprep.subr.mxu0 0.0
    %568 = vmatpush1.msra.mxu0 0.0
    %569 = vmatprep.subr.mxu0 0.0
    %570 = vmatpush1.msra.mxu0 0.0
    %571 = vmatprep.subr.mxu0 0.0
    %572 = vmatpush1.msra.mxu0 0.0
    %573 = vmatprep.subr.mxu0 0.0
    %574 = vmatpush1.msra.mxu0 0.0
    %575 = vmatprep.subr.mxu0 0.0
    %576 = vmatpush1.msra.mxu0 0.0
    %577 = vmatprep.subr.mxu0 0.0
    %578 = vmatpush1.msra.mxu0 0.0
    %579 = vmatprep.subr.mxu0 0.0
    %580 = vmatpush1.msra.mxu0 0.0
    %581 = vmatprep.subr.mxu0 0.0
    %582 = vmatpush1.msra.mxu0 0.0
    %583 = vmatprep.subr.mxu0 0.0
    %584 = vmatpush1.msra.mxu0 0.0
    %585 = vmatprep.subr.mxu0 0.0
    %586 = vmatpush1.msra.mxu0 0.0
    %587 = vmatprep.subr.mxu0 0.0
    %588 = vmatpush1.msra.mxu0 0.0
    %589 = vmatprep.subr.mxu0 0.0
    %590 = vmatpush1.msra.mxu0 0.0
    %591 = vmatprep.subr.mxu0 0.0
    %592 = vmatpush1.msra.mxu0 0.0
    %593 = vmatprep.subr.mxu0 0.0
    %594 = vmatpush1.msra.mxu0 0.0
    %595 = vmatprep.subr.mxu0 0.0
    %596 = vmatpush1.msra.mxu0 0.0
    %597 = vmatprep.subr.mxu0 0.0
    %598 = vmatpush1.msra.mxu0 0.0
    %599 = vmatprep.mubr.f32.mxu0 0.0
    %600 = vmatmul.mubr.f32.gmra.mrb[0].mxu0 %v530
    %v601 = vpop.f32.mrb[0].mxu0
    %v602 = vadd.f32 0.0, %v601
    %v603 = vpop.f32.mrb[0].mxu0
    %604 = vmatprep.mubr.f32.mxu0 0.0
    %605 = vmatmul.mubr.f32.gmra.mrb[0].mxu0 %v533
    %v606 = vpop.f32.mrb[0].mxu0
    %v607 = vadd.f32 0.0, %v606
    %v608 = vpop.f32.mrb[0].mxu0
    %609 = vdwg.mxu0
    %v611 = vsel %vm42, %v602, 0
    %v614 = vsel %vm42, %v607, 0
    %616 = vmatprep.subr.mxu0 0.0
    %617 = vmatpush1.msra.mxu0 %v124
    %618 = vmatprep.subr.mxu0 0.0
    %619 = vmatpush1.msra.mxu0 %v125
    %620 = vmatprep.subr.mxu0 0.0
    %621 = vmatpush1.msra.mxu0 %v126
    %622 = vmatprep.subr.mxu0 0.0
    %623 = vmatpush1.msra.mxu0 %v127
    %624 = vmatprep.subr.mxu0 0.0
    %625 = vmatpush1.msra.mxu0 0.0
    %626 = vmatprep.subr.mxu0 0.0
    %627 = vmatpush1.msra.mxu0 0.0
    %628 = vmatprep.subr.mxu0 0.0
    %629 = vmatpush1.msra.mxu0 0.0
    %630 = vmatprep.subr.mxu0 0.0
    %631 = vmatpush1.msra.mxu0 0.0
    %632 = vmatprep.subr.mxu0 0.0
    %633 = vmatpush1.msra.mxu0 0.0
    %634 = vmatprep.subr.mxu0 0.0
    %635 = vmatpush1.msra.mxu0 0.0
    %636 = vmatprep.subr.mxu0 0.0
    %637 = vmatpush1.msra.mxu0 0.0
    %638 = vmatprep.subr.mxu0 0.0
    %639 = vmatpush1.msra.mxu0 0.0
    %640 = vmatprep.subr.mxu0 0.0
    %641 = vmatpush1.msra.mxu0 0.0
    %642 = vmatprep.subr.mxu0 0.0
    %643 = vmatpush1.msra.mxu0 0.0
    %644 = vmatprep.subr.mxu0 0.0
    %645 = vmatpush1.msra.mxu0 0.0
    %646 = vmatprep.subr.mxu0 0.0
    %647 = vmatpush1.msra.mxu0 0.0
    %648 = vmatprep.subr.mxu0 0.0
    %649 = vmatpush1.msra.mxu0 0.0
    %650 = vmatprep.subr.mxu0 0.0
    %651 = vmatpush1.msra.mxu0 0.0
    %652 = vmatprep.subr.mxu0 0.0
    %653 = vmatpush1.msra.mxu0 0.0
    %654 = vmatprep.subr.mxu0 0.0
    %655 = vmatpush1.msra.mxu0 0.0
    %656 = vmatprep.subr.mxu0 0.0
    %657 = vmatpush1.msra.mxu0 0.0
    %658 = vmatprep.subr.mxu0 0.0
    %659 = vmatpush1.msra.mxu0 0.0
    %660 = vmatprep.subr.mxu0 0.0
    %661 = vmatpush1.msra.mxu0 0.0
    %662 = vmatprep.subr.mxu0 0.0
    %663 = vmatpush1.msra.mxu0 0.0
    %664 = vmatprep.subr.mxu0 0.0
    %665 = vmatpush1.msra.mxu0 0.0
    %666 = vmatprep.subr.mxu0 0.0
    %667 = vmatpush1.msra.mxu0 0.0
    %668 = vmatprep.subr.mxu0 0.0
    %669 = vmatpush1.msra.mxu0 0.0
    %670 = vmatprep.subr.mxu0 0.0
    %671 = vmatpush1.msra.mxu0 0.0
    %672 = vmatprep.subr.mxu0 0.0
    %673 = vmatpush1.msra.mxu0 0.0
    %674 = vmatprep.subr.mxu0 0.0
    %675 = vmatpush1.msra.mxu0 0.0
    %676 = vmatprep.subr.mxu0 0.0
    %677 = vmatpush1.msra.mxu0 0.0
    %678 = vmatprep.subr.mxu0 0.0
    %679 = vmatpush1.msra.mxu0 0.0
    %680 = vmatprep.mubr.f32.mxu0 0.0
    %681 = vmatmul.mubr.f32.gmra.mrb[0].mxu0 %v611
    %v682 = vpop.f32.mrb[0].mxu0
    %v683 = vadd.f32 0.0, %v682
    %v684 = vpop.f32.mrb[0].mxu0
    %685 = vmatprep.mubr.f32.mxu0 0.0
    %686 = vmatmul.mubr.f32.gmra.mrb[0].mxu0 %v614
    %v687 = vpop.f32.mrb[0].mxu0
    %v688 = vadd.f32 0.0, %v687
    %v689 = vpop.f32.mrb[0].mxu0
    %690 = vdwg.mxu0
    %v691 = vlaneseq
    %v692 = vshrl.u32 %v691, 7
    %v693 = vsub.s32 0, %v692
    %v694 = vrot.slane %v37, %v693
    %696 = vrot.lane.b32.xlu0 %v694, 64
    %v697 = vpop.permute.xlu0 %696
    %v699 = vadd.f32 %v683, %v697
    %v700 = vadd.f32 %v688, %v697
    %701 = vrot.lane.b32.xlu0 %v26, 64
    %v702 = vpop.permute.xlu0 %701
    %703 = vrot.lane.b32.xlu0 %v27, 64
    %v704 = vpop.permute.xlu0 %703
    %v707 = vadd.f32 %v699, %v702
    %v708 = vadd.f32 %v700, %v704
    %711 = vrot.lane.b32.xlu0 %v707, 64
    %v712 = vpop.permute.xlu0 %711
    %713 = vrot.lane.b32.xlu0 %v708, 64
    %v714 = vpop.permute.xlu0 %713
    %v717 = vsel %vm42, %v712, 0.0
    %718 = vadd.xlane.f32.xlu0 %v717
    %v719 = vpop.xlane.xlu0 %718
    %v720 = vsel %vm42, %v714, 0.0
    %721 = vadd.xlane.f32.xlu0 %v720
    %v722 = vpop.xlane.xlu0 %721
    %v723 = vrcp.pop 32.0
    %v724 = vmul.f32 %v719, %v723
    %v725 = vmul.f32 %v722, %v723
    %v726 = vsub.f32 %v707, %v724
    %v727 = vsub.f32 %v708, %v725
    %v728 = vmul.f32 %v726, %v726
    %v729 = vmul.f32 %v727, %v727
    %732 = vrot.lane.b32.xlu0 %v728, 64
    %v733 = vpop.permute.xlu0 %732
    %734 = vrot.lane.b32.xlu0 %v729, 64
    %v735 = vpop.permute.xlu0 %734
    %v738 = vsel %vm42, %v733, 0.0
    %739 = vadd.xlane.f32.xlu0 %v738
    %v740 = vpop.xlane.xlu0 %739
    %v741 = vsel %vm42, %v735, 0.0
    %742 = vadd.xlane.f32.xlu0 %v741
    %v743 = vpop.xlane.xlu0 %742
    %v744 = vmul.f32 %v740, %v723
    %v745 = vmul.f32 %v743, %v723
    %v746 = vadd.f32 %v744, 1e-05
    %v747 = vadd.f32 %v745, 1e-05
    %v748 = vrsqrt.pop %v746
    %v749 = vrsqrt.pop %v747
    %v750 = vmul.f32 %v726, %v748
    %v751 = vmul.f32 %v727, %v749
    %v752 = vlaneseq
    %v753 = vshrl.u32 %v752, 7
    %v754 = vsub.s32 1, %v753
    %v755 = vrot.slane %v37, %v754
    %757 = vrot.lane.b32.xlu0 %v755, 64
    %v758 = vpop.permute.xlu0 %757
    %v760 = vmul.f32 %v750, %v758
    %v761 = vmul.f32 %v751, %v758
    %v762 = vlaneseq
    %v763 = vshrl.u32 %v762, 7
    %v764 = vsub.s32 2, %v763
    %v765 = vrot.slane %v37, %v764
    %767 = vrot.lane.b32.xlu0 %v765, 64
    %v768 = vpop.permute.xlu0 %767
    %v770 = vadd.f32 %v760, %v768
    %v771 = vadd.f32 %v761, %v768
    %774 = vrot.lane.b32.xlu0 %v770, 64
    %v775 = vpop.permute.xlu0 %774
    %776 = vrot.lane.b32.xlu0 %v771, 64
    %v777 = vpop.permute.xlu0 %776
    %v778 = vsel %vm42, %v775, 0
    %v780 = vsel %vm42, %v777, 0
    %782 = vmatprep.subr.mxu0 0.0
    %783 = vmatpush1.msra.mxu0 %v38
    %784 = vmatprep.subr.mxu0 0.0
    %785 = vmatpush1.msra.mxu0 %v39
    %786 = vmatprep.subr.mxu0 0.0
    %787 = vmatpush1.msra.mxu0 %v40
    %788 = vmatprep.subr.mxu0 0.0
    %789 = vmatpush1.msra.mxu0 %v41
    %790 = vmatprep.subr.mxu0 0.0
    %791 = vmatpush1.msra.mxu0 0.0
    %792 = vmatprep.subr.mxu0 0.0
    %793 = vmatpush1.msra.mxu0 0.0
    %794 = vmatprep.subr.mxu0 0.0
    %795 = vmatpush1.msra.mxu0 0.0
    %796 = vmatprep.subr.mxu0 0.0
    %797 = vmatpush1.msra.mxu0 0.0
    %798 = vmatprep.subr.mxu0 0.0
    %799 = vmatpush1.msra.mxu0 0.0
    %800 = vmatprep.subr.mxu0 0.0
    %801 = vmatpush1.msra.mxu0 0.0
    %802 = vmatprep.subr.mxu0 0.0
    %803 = vmatpush1.msra.mxu0 0.0
    %804 = vmatprep.subr.mxu0 0.0
    %805 = vmatpush1.msra.mxu0 0.0
    %806 = vmatprep.subr.mxu0 0.0
    %807 = vmatpush1.msra.mxu0 0.0
    %808 = vmatprep.subr.mxu0 0.0
    %809 = vmatpush1.msra.mxu0 0.0
    %810 = vmatprep.subr.mxu0 0.0
    %811 = vmatpush1.msra.mxu0 0.0
    %812 = vmatprep.subr.mxu0 0.0
    %813 = vmatpush1.msra.mxu0 0.0
    %814 = vmatprep.subr.mxu0 0.0
    %815 = vmatpush1.msra.mxu0 0.0
    %816 = vmatprep.subr.mxu0 0.0
    %817 = vmatpush1.msra.mxu0 0.0
    %818 = vmatprep.subr.mxu0 0.0
    %819 = vmatpush1.msra.mxu0 0.0
    %820 = vmatprep.subr.mxu0 0.0
    %821 = vmatpush1.msra.mxu0 0.0
    %822 = vmatprep.subr.mxu0 0.0
    %823 = vmatpush1.msra.mxu0 0.0
    %824 = vmatprep.subr.mxu0 0.0
    %825 = vmatpush1.msra.mxu0 0.0
    %826 = vmatprep.subr.mxu0 0.0
    %827 = vmatpush1.msra.mxu0 0.0
    %828 = vmatprep.subr.mxu0 0.0
    %829 = vmatpush1.msra.mxu0 0.0
    %830 = vmatprep.subr.mxu0 0.0
    %831 = vmatpush1.msra.mxu0 0.0
    %832 = vmatprep.subr.mxu0 0.0
    %833 = vmatpush1.msra.mxu0 0.0
    %834 = vmatprep.subr.mxu0 0.0
    %835 = vmatpush1.msra.mxu0 0.0
    %836 = vmatprep.subr.mxu0 0.0
    %837 = vmatpush1.msra.mxu0 0.0
    %838 = vmatprep.subr.mxu0 0.0
    %839 = vmatpush1.msra.mxu0 0.0
    %840 = vmatprep.subr.mxu0 0.0
    %841 = vmatpush1.msra.mxu0 0.0
    %842 = vmatprep.subr.mxu0 0.0
    %843 = vmatpush1.msra.mxu0 0.0
    %844 = vmatprep.subr.mxu0 0.0
    %845 = vmatpush1.msra.mxu0 0.0
    %846 = vmatprep.mubr.f32.mxu0 0.0
    %847 = vmatmul.mubr.f32.gmra.mrb[0].mxu0 %v778
    %v848 = vpop.f32.mrb[0].mxu0
    %v849 = vadd.f32 0.0, %v848
    %v850 = vpop.f32.mrb[0].mxu0
    %851 = vmatprep.mubr.f32.mxu0 0.0
    %852 = vmatmul.mubr.f32.gmra.mrb[0].mxu0 %v780
    %v853 = vpop.f32.mrb[0].mxu0
    %v854 = vadd.f32 0.0, %v853
    %v855 = vpop.f32.mrb[0].mxu0
    %856 = vdwg.mxu0
    %v857 = vmul.f32 %v253, %v207
    %v858 = vmul.f32 %v253, %v212
    %v859 = vmul.f32 %v257, %v207
    %v860 = vmul.f32 %v257, %v212
    %v861 = vmul.f32 %v261, %v207
    %v862 = vmul.f32 %v261, %v212
    %v863 = vmul.f32 %v265, %v207
    %v864 = vmul.f32 %v265, %v212
    %867 = vrot.lane.b32.xlu0 %v217, 96
    %v868 = vpop.permute.xlu0 %867
    %869 = vrot.lane.b32.xlu0 %v222, 96
    %v870 = vpop.permute.xlu0 %869
    %v873 = vmul.f32 %v253, %v868
    %v874 = vmul.f32 %v253, %v870
    %v875 = vmul.f32 %v257, %v868
    %v876 = vmul.f32 %v257, %v870
    %v877 = vmul.f32 %v261, %v868
    %v878 = vmul.f32 %v261, %v870
    %v879 = vmul.f32 %v265, %v868
    %v880 = vmul.f32 %v265, %v870
    %883 = vrot.lane.b32.xlu0 %v849, 32
    %v884 = vpop.permute.xlu0 %883
    %885 = vrot.lane.b32.xlu0 %v854, 32
    %v886 = vpop.permute.xlu0 %885
    %v887 = vsel %vm42, %v884, 0
    %v889 = vsel %vm42, %v886, 0
    %v892 = vsel %vm42, %v857, 0
    %v895 = vsel %vm42, %v858, 0
    %v898 = vsel %vm42, %v859, 0
    %v901 = vsel %vm42, %v860, 0
    %v904 = vsel %vm42, %v861, 0
    %v907 = vsel %vm42, %v862, 0
    %v910 = vsel %vm42, %v863, 0
    %v913 = vsel %vm42, %v864, 0
    %915 = vmatprep.subr.mxu0 0.0
    %916 = vmatpush1.xpose.msra.mxu0 %v892
    %917 = vmatprep.subr.mxu0 0.0
    %918 = vmatpush1.xpose.msra.mxu0 %v895
    %919 = vmatprep.subr.mxu0 0.0
    %920 = vmatpush1.xpose.msra.mxu0 %v898
    %921 = vmatprep.subr.mxu0 0.0
    %922 = vmatpush1.xpose.msra.mxu0 %v901
    %923 = vmatprep.subr.mxu0 0.0
    %924 = vmatpush1.xpose.msra.mxu0 %v904
    %925 = vmatprep.subr.mxu0 0.0
    %926 = vmatpush1.xpose.msra.mxu0 %v907
    %927 = vmatprep.subr.mxu0 0.0
    %928 = vmatpush1.xpose.msra.mxu0 %v910
    %929 = vmatprep.subr.mxu0 0.0
    %930 = vmatpush1.xpose.msra.mxu0 %v913
    %931 = vmatprep.subr.mxu0 0.0
    %932 = vmatpush1.xpose.msra.mxu0 0.0
    %933 = vmatprep.subr.mxu0 0.0
    %934 = vmatpush1.xpose.msra.mxu0 0.0
    %935 = vmatprep.subr.mxu0 0.0
    %936 = vmatpush1.xpose.msra.mxu0 0.0
    %937 = vmatprep.subr.mxu0 0.0
    %938 = vmatpush1.xpose.msra.mxu0 0.0
    %939 = vmatprep.subr.mxu0 0.0
    %940 = vmatpush1.xpose.msra.mxu0 0.0
    %941 = vmatprep.subr.mxu0 0.0
    %942 = vmatpush1.xpose.msra.mxu0 0.0
    %943 = vmatprep.subr.mxu0 0.0
    %944 = vmatpush1.xpose.msra.mxu0 0.0
    %945 = vmatprep.subr.mxu0 0.0
    %946 = vmatpush1.xpose.msra.mxu0 0.0
    %947 = vmatprep.subr.mxu0 0.0
    %948 = vmatpush1.xpose.msra.mxu0 0.0
    %949 = vmatprep.subr.mxu0 0.0
    %950 = vmatpush1.xpose.msra.mxu0 0.0
    %951 = vmatprep.subr.mxu0 0.0
    %952 = vmatpush1.xpose.msra.mxu0 0.0
    %953 = vmatprep.subr.mxu0 0.0
    %954 = vmatpush1.xpose.msra.mxu0 0.0
    %955 = vmatprep.subr.mxu0 0.0
    %956 = vmatpush1.xpose.msra.mxu0 0.0
    %957 = vmatprep.subr.mxu0 0.0
    %958 = vmatpush1.xpose.msra.mxu0 0.0
    %959 = vmatprep.subr.mxu0 0.0
    %960 = vmatpush1.xpose.msra.mxu0 0.0
    %961 = vmatprep.subr.mxu0 0.0
    %962 = vmatpush1.xpose.msra.mxu0 0.0
    %963 = vmatprep.subr.mxu0 0.0
    %964 = vmatpush1.xpose.msra.mxu0 0.0
    %965 = vmatprep.subr.mxu0 0.0
    %966 = vmatpush1.xpose.msra.mxu0 0.0
    %967 = vmatprep.subr.mxu0 0.0
    %968 = vmatpush1.xpose.msra.mxu0 0.0
    %969 = vmatprep.subr.mxu0 0.0
    %970 = vmatpush1.xpose.msra.mxu0 0.0
    %971 = vmatprep.subr.mxu0 0.0
    %972 = vmatpush1.xpose.msra.mxu0 0.0
    %973 = vmatprep.subr.mxu0 0.0
    %974 = vmatpush1.xpose.msra.mxu0 0.0
    %975 = vmatprep.subr.mxu0 0.0
    %976 = vmatpush1.xpose.msra.mxu0 0.0
    %977 = vmatprep.subr.mxu0 0.0
    %978 = vmatpush1.xpose.msra.mxu0 0.0
    %979 = vmatprep.mubr.f32.mxu0 0.0
    %980 = vmatmul.mubr.f32.gmra.mrb[0].mxu0 %v887
    %v981 = vpop.f32.mrb[0].mxu0
    %v982 = vadd.f32 %v35, %v981
    %v983 = vpop.f32.mrb[0].mxu0
    %984 = vmatprep.mubr.f32.mxu0 0.0
    %985 = vmatmul.mubr.f32.gmra.mrb[0].mxu0 %v889
    %v986 = vpop.f32.mrb[0].mxu0
    %v987 = vadd.f32 %v36, %v986
    %v988 = vpop.f32.mrb[0].mxu0
    %989 = vdwg.mxu0
    %v990 = vmul.f32 %v982, 0.35355338
    %v991 = vmul.f32 %v987, 0.35355338
    %v992 = vsel %vm405, %v990, -inf
    %993 = vmax.xlane.f32.xlu0 %v992
    %v994 = vpop.xlane.xlu0 %993
    %v995 = vsel %vm405, %v991, -inf
    %996 = vmax.xlane.f32.xlu0 %v995
    %v997 = vpop.xlane.xlu0 %996
    %v998 = vsub.f32 %v990, %v994
    %v999 = vsub.f32 %v991, %v997
    %v1000 = vmul.f32 %v998, 1.442695
    %v1001 = vpow.pop %v1000
    %v1002 = vmul.f32 %v999, 1.442695
    %v1003 = vpow.pop %v1002
    %v1004 = vsel %vm405, %v1001, 0.0
    %1005 = vadd.xlane.f32.xlu0 %v1004
    %v1006 = vpop.xlane.xlu0 %1005
    %v1007 = vsel %vm405, %v1003, 0.0
    %1008 = vadd.xlane.f32.xlu0 %v1007
    %v1009 = vpop.xlane.xlu0 %1008
    %v1010 = vrcp.pop %v1006
    %v1011 = vmul.f32 %v1001, %v1010
    %v1012 = vrcp.pop %v1009
    %v1013 = vmul.f32 %v1003, %v1012
    %v1014 = vsel %vm428, %v990, -inf
    %1015 = vmax.xlane.f32.xlu0 %v1014
    %v1016 = vpop.xlane.xlu0 %1015
    %v1017 = vsel %vm428, %v991, -inf
    %1018 = vmax.xlane.f32.xlu0 %v1017
    %v1019 = vpop.xlane.xlu0 %1018
    %v1020 = vsub.f32 %v990, %v1016
    %v1021 = vsub.f32 %v991, %v1019
    %v1022 = vmul.f32 %v1020, 1.442695
    %v1023 = vpow.pop %v1022
    %v1024 = vmul.f32 %v1021, 1.442695
    %v1025 = vpow.pop %v1024
    %1028 = vrot.lane.b32.xlu0 %v1023, 112
    %v1029 = vpop.permute.xlu0 %1028
    %1030 = vrot.lane.b32.xlu0 %v1025, 112
    %v1031 = vpop.permute.xlu0 %1030
    %v1034 = vsel %vm405, %v1029, 0.0
    %1035 = vadd.xlane.f32.xlu0 %v1034
    %v1036 = vpop.xlane.xlu0 %1035
    %v1037 = vsel %vm405, %v1031, 0.0
    %1038 = vadd.xlane.f32.xlu0 %v1037
    %v1039 = vpop.xlane.xlu0 %1038
    %v1040 = vrcp.pop %v1036
    %v1041 = vmul.f32 %v1023, %v1040
    %v1042 = vrcp.pop %v1039
    %v1043 = vmul.f32 %v1025, %v1042
    %v1044 = vsel %vm459, %v990, -inf
    %1045 = vmax.xlane.f32.xlu0 %v1044
    %v1046 = vpop.xlane.xlu0 %1045
    %v1047 = vsel %vm459, %v991, -inf
    %1048 = vmax.xlane.f32.xlu0 %v1047
    %v1049 = vpop.xlane.xlu0 %1048
    %v1050 = vsub.f32 %v990, %v1046
    %v1051 = vsub.f32 %v991, %v1049
    %v1052 = vmul.f32 %v1050, 1.442695
    %v1053 = vpow.pop %v1052
    %v1054 = vmul.f32 %v1051, 1.442695
    %v1055 = vpow.pop %v1054
    %1058 = vrot.lane.b32.xlu0 %v1053, 96
    %v1059 = vpop.permute.xlu0 %1058
    %1060 = vrot.lane.b32.xlu0 %v1055, 96
    %v1061 = vpop.permute.xlu0 %1060
    %v1064 = vsel %vm405, %v1059, 0.0
    %1065 = vadd.xlane.f32.xlu0 %v1064
    %v1066 = vpop.xlane.xlu0 %1065
    %v1067 = vsel %vm405, %v1061, 0.0
    %1068 = vadd.xlane.f32.xlu0 %v1067
    %v1069 = vpop.xlane.xlu0 %1068
    %v1070 = vrcp.pop %v1066
    %v1071 = vmul.f32 %v1053, %v1070
    %v1072 = vrcp.pop %v1069
    %v1073 = vmul.f32 %v1055, %v1072
    %v1074 = vsel %vm490, %v990, -inf
    %1075 = vmax.xlane.f32.xlu0 %v1074
    %v1076 = vpop.xlane.xlu0 %1075
    %v1077 = vsel %vm490, %v991, -inf
    %1078 = vmax.xlane.f32.xlu0 %v1077
    %v1079 = vpop.xlane.xlu0 %1078
    %v1080 = vsub.f32 %v990, %v1076
    %v1081 = vsub.f32 %v991, %v1079
    %v1082 = vmul.f32 %v1080, 1.442695
    %v1083 = vpow.pop %v1082
    %v1084 = vmul.f32 %v1081, 1.442695
    %v1085 = vpow.pop %v1084
    %1088 = vrot.lane.b32.xlu0 %v1083, 80
    %v1089 = vpop.permute.xlu0 %1088
    %1090 = vrot.lane.b32.xlu0 %v1085, 80
    %v1091 = vpop.permute.xlu0 %1090
    %v1094 = vsel %vm405, %v1089, 0.0
    %1095 = vadd.xlane.f32.xlu0 %v1094
    %v1096 = vpop.xlane.xlu0 %1095
    %v1097 = vsel %vm405, %v1091, 0.0
    %1098 = vadd.xlane.f32.xlu0 %v1097
    %v1099 = vpop.xlane.xlu0 %1098
    %v1100 = vrcp.pop %v1096
    %v1101 = vmul.f32 %v1083, %v1100
    %v1102 = vrcp.pop %v1099
    %v1103 = vmul.f32 %v1085, %v1102
    %v1104 = vsel %vm405, %v1011, %v1041
    %v1105 = vsel %vm405, %v1013, %v1043
    %v1106 = vsel %vm42, %v1104, %v1071
    %v1107 = vsel %vm42, %v1105, %v1073
    %v1108 = vsel %vm525, %v1106, %v1101
    %v1109 = vsel %vm525, %v1107, %v1103
    %v1111 = vsel %vm528, %v1108, 0
    %v1114 = vsel %vm528, %v1109, 0
    %1116 = vmatprep.subr.mxu0 0.0
    %1117 = vmatpush1.msra.mxu0 %v873
    %1118 = vmatprep.subr.mxu0 0.0
    %1119 = vmatpush1.msra.mxu0 %v874
    %1120 = vmatprep.subr.mxu0 0.0
    %1121 = vmatpush1.msra.mxu0 %v875
    %1122 = vmatprep.subr.mxu0 0.0
    %1123 = vmatpush1.msra.mxu0 %v876
    %1124 = vmatprep.subr.mxu0 0.0
    %1125 = vmatpush1.msra.mxu0 %v877
    %1126 = vmatprep.subr.mxu0 0.0
    %1127 = vmatpush1.msra.mxu0 %v878
    %1128 = vmatprep.subr.mxu0 0.0
    %1129 = vmatpush1.msra.mxu0 %v879
    %1130 = vmatprep.subr.mxu0 0.0
    %1131 = vmatpush1.msra.mxu0 %v880
    %1132 = vmatprep.subr.mxu0 0.0
    %1133 = vmatpush1.msra.mxu0 0.0
    %1134 = vmatprep.subr.mxu0 0.0
    %1135 = vmatpush1.msra.mxu0 0.0
    %1136 = vmatprep.subr.mxu0 0.0
    %1137 = vmatpush1.msra.mxu0 0.0
    %1138 = vmatprep.subr.mxu0 0.0
    %1139 = vmatpush1.msra.mxu0 0.0
    %1140 = vmatprep.subr.mxu0 0.0
    %1141 = vmatpush1.msra.mxu0 0.0
    %1142 = vmatprep.subr.mxu0 0.0
    %1143 = vmatpush1.msra.mxu0 0.0
    %1144 = vmatprep.subr.mxu0 0.0
    %1145 = vmatpush1.msra.mxu0 0.0
    %1146 = vmatprep.subr.mxu0 0.0
    %1147 = vmatpush1.msra.mxu0 0.0
    %1148 = vmatprep.subr.mxu0 0.0
    %1149 = vmatpush1.msra.mxu0 0.0
    %1150 = vmatprep.subr.mxu0 0.0
    %1151 = vmatpush1.msra.mxu0 0.0
    %1152 = vmatprep.subr.mxu0 0.0
    %1153 = vmatpush1.msra.mxu0 0.0
    %1154 = vmatprep.subr.mxu0 0.0
    %1155 = vmatpush1.msra.mxu0 0.0
    %1156 = vmatprep.subr.mxu0 0.0
    %1157 = vmatpush1.msra.mxu0 0.0
    %1158 = vmatprep.subr.mxu0 0.0
    %1159 = vmatpush1.msra.mxu0 0.0
    %1160 = vmatprep.subr.mxu0 0.0
    %1161 = vmatpush1.msra.mxu0 0.0
    %1162 = vmatprep.subr.mxu0 0.0
    %1163 = vmatpush1.msra.mxu0 0.0
    %1164 = vmatprep.subr.mxu0 0.0
    %1165 = vmatpush1.msra.mxu0 0.0
    %1166 = vmatprep.subr.mxu0 0.0
    %1167 = vmatpush1.msra.mxu0 0.0
    %1168 = vmatprep.subr.mxu0 0.0
    %1169 = vmatpush1.msra.mxu0 0.0
    %1170 = vmatprep.subr.mxu0 0.0
    %1171 = vmatpush1.msra.mxu0 0.0
    %1172 = vmatprep.subr.mxu0 0.0
    %1173 = vmatpush1.msra.mxu0 0.0
    %1174 = vmatprep.subr.mxu0 0.0
    %1175 = vmatpush1.msra.mxu0 0.0
    %1176 = vmatprep.subr.mxu0 0.0
    %1177 = vmatpush1.msra.mxu0 0.0
    %1178 = vmatprep.subr.mxu0 0.0
    %1179 = vmatpush1.msra.mxu0 0.0
    %1180 = vmatprep.mubr.f32.mxu0 0.0
    %1181 = vmatmul.mubr.f32.gmra.mrb[0].mxu0 %v1111
    %v1182 = vpop.f32.mrb[0].mxu0
    %v1183 = vadd.f32 0.0, %v1182
    %v1184 = vpop.f32.mrb[0].mxu0
    %1185 = vmatprep.mubr.f32.mxu0 0.0
    %1186 = vmatmul.mubr.f32.gmra.mrb[0].mxu0 %v1114
    %v1187 = vpop.f32.mrb[0].mxu0
    %v1188 = vadd.f32 0.0, %v1187
    %v1189 = vpop.f32.mrb[0].mxu0
    %1190 = vdwg.mxu0
    %v1192 = vsel %vm42, %v1183, 0
    %v1195 = vsel %vm42, %v1188, 0
    %1197 = vmatprep.subr.mxu0 0.0
    %1198 = vmatpush1.msra.mxu0 %v124
    %1199 = vmatprep.subr.mxu0 0.0
    %1200 = vmatpush1.msra.mxu0 %v125
    %1201 = vmatprep.subr.mxu0 0.0
    %1202 = vmatpush1.msra.mxu0 %v126
    %1203 = vmatprep.subr.mxu0 0.0
    %1204 = vmatpush1.msra.mxu0 %v127
    %1205 = vmatprep.subr.mxu0 0.0
    %1206 = vmatpush1.msra.mxu0 0.0
    %1207 = vmatprep.subr.mxu0 0.0
    %1208 = vmatpush1.msra.mxu0 0.0
    %1209 = vmatprep.subr.mxu0 0.0
    %1210 = vmatpush1.msra.mxu0 0.0
    %1211 = vmatprep.subr.mxu0 0.0
    %1212 = vmatpush1.msra.mxu0 0.0
    %1213 = vmatprep.subr.mxu0 0.0
    %1214 = vmatpush1.msra.mxu0 0.0
    %1215 = vmatprep.subr.mxu0 0.0
    %1216 = vmatpush1.msra.mxu0 0.0
    %1217 = vmatprep.subr.mxu0 0.0
    %1218 = vmatpush1.msra.mxu0 0.0
    %1219 = vmatprep.subr.mxu0 0.0
    %1220 = vmatpush1.msra.mxu0 0.0
    %1221 = vmatprep.subr.mxu0 0.0
    %1222 = vmatpush1.msra.mxu0 0.0
    %1223 = vmatprep.subr.mxu0 0.0
    %1224 = vmatpush1.msra.mxu0 0.0
    %1225 = vmatprep.subr.mxu0 0.0
    %1226 = vmatpush1.msra.mxu0 0.0
    %1227 = vmatprep.subr.mxu0 0.0
    %1228 = vmatpush1.msra.mxu0 0.0
    %1229 = vmatprep.subr.mxu0 0.0
    %1230 = vmatpush1.msra.mxu0 0.0
    %1231 = vmatprep.subr.mxu0 0.0
    %1232 = vmatpush1.msra.mxu0 0.0
    %1233 = vmatprep.subr.mxu0 0.0
    %1234 = vmatpush1.msra.mxu0 0.0
    %1235 = vmatprep.subr.mxu0 0.0
    %1236 = vmatpush1.msra.mxu0 0.0
    %1237 = vmatprep.subr.mxu0 0.0
    %1238 = vmatpush1.msra.mxu0 0.0
    %1239 = vmatprep.subr.mxu0 0.0
    %1240 = vmatpush1.msra.mxu0 0.0
    %1241 = vmatprep.subr.mxu0 0.0
    %1242 = vmatpush1.msra.mxu0 0.0
    %1243 = vmatprep.subr.mxu0 0.0
    %1244 = vmatpush1.msra.mxu0 0.0
    %1245 = vmatprep.subr.mxu0 0.0
    %1246 = vmatpush1.msra.mxu0 0.0
    %1247 = vmatprep.subr.mxu0 0.0
    %1248 = vmatpush1.msra.mxu0 0.0
    %1249 = vmatprep.subr.mxu0 0.0
    %1250 = vmatpush1.msra.mxu0 0.0
    %1251 = vmatprep.subr.mxu0 0.0
    %1252 = vmatpush1.msra.mxu0 0.0
    %1253 = vmatprep.subr.mxu0 0.0
    %1254 = vmatpush1.msra.mxu0 0.0
    %1255 = vmatprep.subr.mxu0 0.0
    %1256 = vmatpush1.msra.mxu0 0.0
    %1257 = vmatprep.subr.mxu0 0.0
    %1258 = vmatpush1.msra.mxu0 0.0
    %1259 = vmatprep.subr.mxu0 0.0
    %1260 = vmatpush1.msra.mxu0 0.0
    %1261 = vmatprep.mubr.f32.mxu0 0.0
    %1262 = vmatmul.mubr.f32.gmra.mrb[0].mxu0 %v1192
    %v1263 = vpop.f32.mrb[0].mxu0
    %v1264 = vadd.f32 0.0, %v1263
    %v1265 = vpop.f32.mrb[0].mxu0
    %1266 = vmatprep.mubr.f32.mxu0 0.0
    %1267 = vmatmul.mubr.f32.gmra.mrb[0].mxu0 %v1195
    %v1268 = vpop.f32.mrb[0].mxu0
    %v1269 = vadd.f32 0.0, %v1268
    %v1270 = vpop.f32.mrb[0].mxu0
    %1271 = vdwg.mxu0
    %v1272 = vlaneseq
    %v1273 = vshrl.u32 %v1272, 7
    %v1274 = vsub.s32 3, %v1273
    %v1275 = vrot.slane %v37, %v1274
    %1277 = vrot.lane.b32.xlu0 %v1275, 96
    %v1278 = vpop.permute.xlu0 %1277
    %v1280 = vadd.f32 %v1264, %v1278
    %v1281 = vadd.f32 %v1269, %v1278
    %1282 = vrot.lane.b32.xlu0 %v770, 32
    %v1283 = vpop.permute.xlu0 %1282
    %1284 = vrot.lane.b32.xlu0 %v771, 32
    %v1285 = vpop.permute.xlu0 %1284
    %v1288 = vadd.f32 %v1280, %v1283
    %v1289 = vadd.f32 %v1281, %v1285
    %1292 = vrot.lane.b32.xlu0 %v1288, 32
    %v1293 = vpop.permute.xlu0 %1292
    %1294 = vrot.lane.b32.xlu0 %v1289, 32
    %v1295 = vpop.permute.xlu0 %1294
    %v1298 = vsel %vm42, %v1293, 0.0
    %1299 = vadd.xlane.f32.xlu0 %v1298
    %v1300 = vpop.xlane.xlu0 %1299
    %v1301 = vsel %vm42, %v1295, 0.0
    %1302 = vadd.xlane.f32.xlu0 %v1301
    %v1303 = vpop.xlane.xlu0 %1302
    %v1304 = vmul.f32 %v1300, %v723
    %v1305 = vmul.f32 %v1303, %v723
    %v1306 = vsub.f32 %v1288, %v1304
    %v1307 = vsub.f32 %v1289, %v1305
    %v1308 = vmul.f32 %v1306, %v1306
    %v1309 = vmul.f32 %v1307, %v1307
    %1312 = vrot.lane.b32.xlu0 %v1308, 32
    %v1313 = vpop.permute.xlu0 %1312
    %1314 = vrot.lane.b32.xlu0 %v1309, 32
    %v1315 = vpop.permute.xlu0 %1314
    %v1318 = vsel %vm42, %v1313, 0.0
    %1319 = vadd.xlane.f32.xlu0 %v1318
    %v1320 = vpop.xlane.xlu0 %1319
    %v1321 = vsel %vm42, %v1315, 0.0
    %1322 = vadd.xlane.f32.xlu0 %v1321
    %v1323 = vpop.xlane.xlu0 %1322
    %v1324 = vmul.f32 %v1320, %v723
    %v1325 = vmul.f32 %v1323, %v723
    %v1326 = vadd.f32 %v1324, 1e-05
    %v1327 = vadd.f32 %v1325, 1e-05
    %v1328 = vrsqrt.pop %v1326
    %v1329 = vrsqrt.pop %v1327
    %v1330 = vmul.f32 %v1306, %v1328
    %v1331 = vmul.f32 %v1307, %v1329
    %v1332 = vlaneseq
    %v1333 = vshrl.u32 %v1332, 7
    %v1334 = vsub.s32 4, %v1333
    %v1335 = vrot.slane %v37, %v1334
    %1337 = vrot.lane.b32.xlu0 %v1335, 96
    %v1338 = vpop.permute.xlu0 %1337
    %v1340 = vmul.f32 %v1330, %v1338
    %v1341 = vmul.f32 %v1331, %v1338
    %v1342 = vlaneseq
    %v1343 = vshrl.u32 %v1342, 7
    %v1344 = vsub.s32 5, %v1343
    %v1345 = vrot.slane %v37, %v1344
    %1347 = vrot.lane.b32.xlu0 %v1345, 96
    %v1348 = vpop.permute.xlu0 %1347
    %v1350 = vadd.f32 %v1340, %v1348
    %v1351 = vadd.f32 %v1341, %v1348
    %v1352 = vld [vmem:[#allocation2 + $0x40] sm:$0xff]
    %v1353 = vld [vmem:[#allocation2 + $0x48] sm:$0xff]
    %v1354 = vld [vmem:[#allocation2 + $0x50] sm:$0xff]
    %v1355 = vld [vmem:[#allocation2 + $0x58] sm:$0xff]
    %1358 = vrot.lane.b32.xlu0 %v1350, 32
    %v1359 = vpop.permute.xlu0 %1358
    %1360 = vrot.lane.b32.xlu0 %v1351, 32
    %v1361 = vpop.permute.xlu0 %1360
    %v1362 = vsel %vm42, %v1359, 0
    %v1364 = vsel %vm42, %v1361, 0
    %1366 = vmatprep.subr.mxu0 0.0
    %1367 = vmatpush1.msra.mxu0 %v1352
    %1368 = vmatprep.subr.mxu0 0.0
    %1369 = vmatpush1.msra.mxu0 %v1353
    %1370 = vmatprep.subr.mxu0 0.0
    %1371 = vmatpush1.msra.mxu0 %v1354
    %1372 = vmatprep.subr.mxu0 0.0
    %1373 = vmatpush1.msra.mxu0 %v1355
    %1374 = vmatprep.subr.mxu0 0.0
    %1375 = vmatpush1.msra.mxu0 0.0
    %1376 = vmatprep.subr.mxu0 0.0
    %1377 = vmatpush1.msra.mxu0 0.0
    %1378 = vmatprep.subr.mxu0 0.0
    %1379 = vmatpush1.msra.mxu0 0.0
    %1380 = vmatprep.subr.mxu0 0.0
    %1381 = vmatpush1.msra.mxu0 0.0
    %1382 = vmatprep.subr.mxu0 0.0
    %1383 = vmatpush1.msra.mxu0 0.0
    %1384 = vmatprep.subr.mxu0 0.0
    %1385 = vmatpush1.msra.mxu0 0.0
    %1386 = vmatprep.subr.mxu0 0.0
    %1387 = vmatpush1.msra.mxu0 0.0
    %1388 = vmatprep.subr.mxu0 0.0
    %1389 = vmatpush1.msra.mxu0 0.0
    %1390 = vmatprep.subr.mxu0 0.0
    %1391 = vmatpush1.msra.mxu0 0.0
    %1392 = vmatprep.subr.mxu0 0.0
    %1393 = vmatpush1.msra.mxu0 0.0
    %1394 = vmatprep.subr.mxu0 0.0
    %1395 = vmatpush1.msra.mxu0 0.0
    %1396 = vmatprep.subr.mxu0 0.0
    %1397 = vmatpush1.msra.mxu0 0.0
    %1398 = vmatprep.subr.mxu0 0.0
    %1399 = vmatpush1.msra.mxu0 0.0
    %1400 = vmatprep.subr.mxu0 0.0
    %1401 = vmatpush1.msra.mxu0 0.0
    %1402 = vmatprep.subr.mxu0 0.0
    %1403 = vmatpush1.msra.mxu0 0.0
    %1404 = vmatprep.subr.mxu0 0.0
    %1405 = vmatpush1.msra.mxu0 0.0
    %1406 = vmatprep.subr.mxu0 0.0
    %1407 = vmatpush1.msra.mxu0 0.0
    %1408 = vmatprep.subr.mxu0 0.0
    %1409 = vmatpush1.msra.mxu0 0.0
    %1410 = vmatprep.subr.mxu0 0.0
    %1411 = vmatpush1.msra.mxu0 0.0
    %1412 = vmatprep.subr.mxu0 0.0
    %1413 = vmatpush1.msra.mxu0 0.0
    %1414 = vmatprep.subr.mxu0 0.0
    %1415 = vmatpush1.msra.mxu0 0.0
    %1416 = vmatprep.subr.mxu0 0.0
    %1417 = vmatpush1.msra.mxu0 0.0
    %1418 = vmatprep.subr.mxu0 0.0
    %1419 = vmatpush1.msra.mxu0 0.0
    %1420 = vmatprep.subr.mxu0 0.0
    %1421 = vmatpush1.msra.mxu0 0.0
    %1422 = vmatprep.subr.mxu0 0.0
    %1423 = vmatpush1.msra.mxu0 0.0
    %1424 = vmatprep.subr.mxu0 0.0
    %1425 = vmatpush1.msra.mxu0 0.0
    %1426 = vmatprep.subr.mxu0 0.0
    %1427 = vmatpush1.msra.mxu0 0.0
    %1428 = vmatprep.subr.mxu0 0.0
    %1429 = vmatpush1.msra.mxu0 0.0
    %1430 = vmatprep.mubr.f32.mxu0 0.0
    %1431 = vmatmul.mubr.f32.gmra.mrb[0].mxu0 %v1362
    %v1432 = vpop.f32.mrb[0].mxu0
    %v1433 = vadd.f32 0.0, %v1432
    %v1434 = vpop.f32.mrb[0].mxu0
    %1435 = vmatprep.mubr.f32.mxu0 0.0
    %1436 = vmatmul.mubr.f32.gmra.mrb[0].mxu0 %v1364
    %v1437 = vpop.f32.mrb[0].mxu0
    %v1438 = vadd.f32 0.0, %v1437
    %v1439 = vpop.f32.mrb[0].mxu0
    %1440 = vdwg.mxu0
    %v1441 = vlaneseq
    %v1442 = vshrl.u32 %v1441, 7
    %v1443 = vsub.s32 7, %v1442
    %v1444 = vrot.slane %v37, %v1443
    %v1445 = vadd.f32 %v1433, %v1444
    %v1446 = vadd.f32 %v1438, %v1444
    %v1447 = vmax.f32 %v1445, 0.0
    %v1448 = vmax.f32 %v1446, 0.0
    %v1449 = vlaneseq
    %v1450 = vshrl.u32 %v1449, 7
    %v1451 = vsub.s32 6, %v1450
    %v1452 = vrot.slane %v37, %v1451
    %1457 = vrot.lane.b32.xlu0 %v1352, 64
    %v1458 = vpop.permute.xlu0 %1457
    %1459 = vrot.lane.b32.xlu0 %v1353, 64
    %v1460 = vpop.permute.xlu0 %1459
    %1461 = vrot.lane.b32.xlu0 %v1354, 64
    %v1462 = vpop.permute.xlu0 %1461
    %1463 = vrot.lane.b32.xlu0 %v1355, 64
    %v1464 = vpop.permute.xlu0 %1463
    %v1466 = vsel %vm528, %v1447, 0
    %v1469 = vsel %vm528, %v1448, 0
    %v1471 = vsel %vm528, %v1458, 0
    %v1473 = vsel %vm528, %v1460, 0
    %v1475 = vsel %vm528, %v1462, 0
    %v1477 = vsel %vm528, %v1464, 0
    %1479 = vmatprep.subr.mxu0 0.0
    %1480 = vmatpush1.xpose.msra.mxu0 %v1471
    %1481 = vmatprep.subr.mxu0 0.0
    %1482 = vmatpush1.xpose.msra.mxu0 %v1473
    %1483 = vmatprep.subr.mxu0 0.0
    %1484 = vmatpush1.xpose.msra.mxu0 %v1475
    %1485 = vmatprep.subr.mxu0 0.0
    %1486 = vmatpush1.xpose.msra.mxu0 %v1477
    %1487 = vmatprep.subr.mxu0 0.0
    %1488 = vmatpush1.xpose.msra.mxu0 0.0
    %1489 = vmatprep.subr.mxu0 0.0
    %1490 = vmatpush1.xpose.msra.mxu0 0.0
    %1491 = vmatprep.subr.mxu0 0.0
    %1492 = vmatpush1.xpose.msra.mxu0 0.0
    %1493 = vmatprep.subr.mxu0 0.0
    %1494 = vmatpush1.xpose.msra.mxu0 0.0
    %1495 = vmatprep.subr.mxu0 0.0
    %1496 = vmatpush1.xpose.msra.mxu0 0.0
    %1497 = vmatprep.subr.mxu0 0.0
    %1498 = vmatpush1.xpose.msra.mxu0 0.0
    %1499 = vmatprep.subr.mxu0 0.0
    %1500 = vmatpush1.xpose.msra.mxu0 0.0
    %1501 = vmatprep.subr.mxu0 0.0
    %1502 = vmatpush1.xpose.msra.mxu0 0.0
    %1503 = vmatprep.subr.mxu0 0.0
    %1504 = vmatpush1.xpose.msra.mxu0 0.0
    %1505 = vmatprep.subr.mxu0 0.0
    %1506 = vmatpush1.xpose.msra.mxu0 0.0
    %1507 = vmatprep.subr.mxu0 0.0
    %1508 = vmatpush1.xpose.msra.mxu0 0.0
    %1509 = vmatprep.subr.mxu0 0.0
    %1510 = vmatpush1.xpose.msra.mxu0 0.0
    %1511 = vmatprep.subr.mxu0 0.0
    %1512 = vmatpush1.xpose.msra.mxu0 0.0
    %1513 = vmatprep.subr.mxu0 0.0
    %1514 = vmatpush1.xpose.msra.mxu0 0.0
    %1515 = vmatprep.subr.mxu0 0.0
    %1516 = vmatpush1.xpose.msra.mxu0 0.0
    %1517 = vmatprep.subr.mxu0 0.0
    %1518 = vmatpush1.xpose.msra.mxu0 0.0
    %1519 = vmatprep.subr.mxu0 0.0
    %1520 = vmatpush1.xpose.msra.mxu0 0.0
    %1521 = vmatprep.subr.mxu0 0.0
    %1522 = vmatpush1.xpose.msra.mxu0 0.0
    %1523 = vmatprep.subr.mxu0 0.0
    %1524 = vmatpush1.xpose.msra.mxu0 0.0
    %1525 = vmatprep.subr.mxu0 0.0
    %1526 = vmatpush1.xpose.msra.mxu0 0.0
    %1527 = vmatprep.subr.mxu0 0.0
    %1528 = vmatpush1.xpose.msra.mxu0 0.0
    %1529 = vmatprep.subr.mxu0 0.0
    %1530 = vmatpush1.xpose.msra.mxu0 0.0
    %1531 = vmatprep.subr.mxu0 0.0
    %1532 = vmatpush1.xpose.msra.mxu0 0.0
    %1533 = vmatprep.subr.mxu0 0.0
    %1534 = vmatpush1.xpose.msra.mxu0 0.0
    %1535 = vmatprep.subr.mxu0 0.0
    %1536 = vmatpush1.xpose.msra.mxu0 0.0
    %1537 = vmatprep.subr.mxu0 0.0
    %1538 = vmatpush1.xpose.msra.mxu0 0.0
    %1539 = vmatprep.subr.mxu0 0.0
    %1540 = vmatpush1.xpose.msra.mxu0 0.0
    %1541 = vmatprep.subr.mxu0 0.0
    %1542 = vmatpush1.xpose.msra.mxu0 0.0
    %1543 = vmatprep.mubr.f32.mxu0 0.0
    %1544 = vmatmul.mubr.f32.gmra.mrb[0].mxu0 %v1466
    %v1545 = vpop.f32.mrb[0].mxu0
    %v1546 = vadd.f32 %v1452, %v1545
    %v1547 = vpop.f32.mrb[0].mxu0
    %1548 = vmatprep.mubr.f32.mxu0 0.0
    %1549 = vmatmul.mubr.f32.gmra.mrb[0].mxu0 %v1469
    %v1550 = vpop.f32.mrb[0].mxu0
    %v1551 = vadd.f32 %v1452, %v1550
    %v1552 = vpop.f32.mrb[0].mxu0
    %1553 = vdwg.mxu0
    %v1556 = vadd.f32 %v1546, %v1359
    %v1557 = vadd.f32 %v1551, %v1361
    %v1558 = vsel %vm42, %v1556, 0.0
    %1559 = vadd.xlane.f32.xlu0 %v1558
    %v1560 = vpop.xlane.xlu0 %1559
    %v1561 = vsel %vm42, %v1557, 0.0
    %1562 = vadd.xlane.f32.xlu0 %v1561
    %v1563 = vpop.xlane.xlu0 %1562
    %v1564 = vmul.f32 %v1560, %v723
    %v1565 = vmul.f32 %v1563, %v723
    %v1566 = vsub.f32 %v1556, %v1564
    %v1567 = vsub.f32 %v1557, %v1565
    %v1568 = vmul.f32 %v1566, %v1566
    %v1569 = vmul.f32 %v1567, %v1567
    %v1570 = vsel %vm42, %v1568, 0.0
    %1571 = vadd.xlane.f32.xlu0 %v1570
    %v1572 = vpop.xlane.xlu0 %1571
    %v1573 = vsel %vm42, %v1569, 0.0
    %1574 = vadd.xlane.f32.xlu0 %v1573
    %v1575 = vpop.xlane.xlu0 %1574
    %v1576 = vmul.f32 %v1572, %v723
    %v1577 = vmul.f32 %v1575, %v723
    %v1578 = vadd.f32 %v1576, 1e-05
    %v1579 = vadd.f32 %v1577, 1e-05
    %v1580 = vrsqrt.pop %v1578
    %v1581 = vrsqrt.pop %v1579
    %v1582 = vmul.f32 %v1566, %v1580
    %v1583 = vmul.f32 %v1567, %v1581
    %v1584 = vmul.f32 %v1582, %v1335
    %v1585 = vmul.f32 %v1583, %v1335
    %v1586 = vadd.f32 %v1584, %v1345
    %v1587 = vadd.f32 %v1585, %v1345
    %1588 = vst.msk [vmem:[#allocation5] sm:$0xff] %vm42, %v1586
    %1589 = vst.msk [vmem:[#allocation5 + $0x8] sm:$0xff] %vm42, %v1587
    // Predicated region
    $region14: #{run.1} parent=1 // pred_check
      _
    $region15: #{run.1} parent=1 // pred_check_branch
      %1591 = sbr.rel (0) target = $region17
    $region16: #{run.1} parent=1 // pred_region
      %s1593 = ssub.s32 256, 256
      %1594 = vsyncadd [#allocation4], %s1593
      %s1595 = sshll.u32 [#allocation5], 4
      %s1596 = int_to_ptr.vmem [resolvable:$true] %s1595
      %1601 = dma.vmem_to_hbm [thread:$0]  %s1596, 256, %s2, [#allocation4], 128, 128, 8
    $region17: #{run.1} parent=1 // pred_fallthru
      _
    // Predicated region
    $region18: #{run.1} parent=1 // pred_check
      _
    $region19: #{run.1} parent=1 // pred_check_branch
      %1603 = sbr.rel (0) target = $region21
    $region20: #{run.1} parent=1 // pred_region
      %1604 = dma.done [#allocation4], 256
    $region21: #{run.1} parent=1 // pred_fallthru
      _
    %1605 = vsyncpa [#allocation3], 1
    %1606 = vsyncpa [#allocation4], 1

</llo_original>
